<compile_context>
chip_gen: v6e
topology: v6e:2x2x1
jax: 0.10.0
libtpu: 0.0.40
codegen_flags: <defaults>
</compile_context>

<pallas_src>
import functools

import jax
import jax.numpy as jnp
from jax.experimental import pallas as pl
from jax.experimental.pallas import tpu as pltpu

BN_EPS = 1e-5


def _round_up(x, m):
    return -(-x // m) * m


def _dw_mac_dtype():
    """bf16 depthwise MACs on chips with a bf16 VPU (v6e/v7x); f32 otherwise (v5e and older)."""
    try:
        kind = jax.devices()[0].device_kind.lower()
    except Exception:  # pragma: no cover - fall back to the always-correct path
        return jnp.float32
    if ("v6" in kind) or ("v7" in kind) or ("7x" in kind):
        return jnp.bfloat16
    return jnp.float32


_DW_MAC_DTYPE = _dw_mac_dtype()


def _vmem_limit_bytes(hp, wp, cin, n_pix, coutp):
    """Approximate VMEM need: double-buffered bf16 in/out blocks + weights + f32 intermediate."""
    lane = 128
    cin_l = _round_up(cin, lane)
    in_blk = hp * _round_up(wp, 16) * cin_l * 2            # bf16 halo-padded input block
    out_blk = _round_up(n_pix, 16) * coutp * 2             # bf16 (Ho*Wo, Coutp) output block
    acc = _round_up(n_pix, 8) * cin_l * 4                  # worst-case f32 dw intermediate
    wts = 9 * cin_l * 2 + cin_l * 4 + _round_up(cin, 16) * coutp * 2 + coutp * 4
    need = 2 * (in_blk + out_blk) + acc + wts + (4 << 20)  # 2x = double buffering + margin
    return int(min(max(need, 16 << 20), 128 << 20))


# ---------------------------------------------------------------------------
# Fused depthwise(3x3)+BN+ReLU -> pointwise(1x1)+BN+ReLU kernel
# ---------------------------------------------------------------------------

def _dws_fused_kernel(x_ref, dww_ref, dwb_ref, pww_ref, pwb_ref, o_ref, *,
                      stride, Ho, Wo, mac_dtype):
    """One batch element per grid step.

    x_ref   : (H+2, W+2, Cin)   halo-padded NHWC input (bf16)
    dww_ref : (9, Cin)          depthwise weights, dw-BN scale folded in (bf16)
    dwb_ref : (1, Cin)          depthwise BN bias (f32)
    pww_ref : (Cin, Coutp)      pointwise weights, pw-BN scale folded in, Coutp lane-padded (bf16)
    pwb_ref : (1, Coutp)        pointwise BN bias, lane-padded (f32)
    o_ref   : (Ho*Wo, Coutp)    output, 2-D lane-dense slab (bf16)
    """
    cin = x_ref.shape[-1]

    dww = dww_ref[...].astype(mac_dtype)                   # (9, Cin)

    # ---- depthwise 3x3: 9 in-kernel taps on the VPU --------------------------
    acc = None
    for ki in range(3):
        if stride == 1:
            row_taps = [x_ref[ki:ki + Ho, kj:kj + Wo, :] for kj in range(3)]
        else:  # stride == 2: deinterleave even/odd W columns once per kernel row
            ev = x_ref[pl.ds(ki, Ho, stride=stride), pl.ds(0, Wo + 1, stride=stride), :]
            od = x_ref[pl.ds(ki, Ho, stride=stride), pl.ds(1, Wo, stride=stride), :]
            row_taps = [ev[:, :Wo, :], od, ev[:, 1:, :]]
        for kj in range(3):
            term = row_taps[kj].astype(mac_dtype) * dww[3 * ki + kj]
            acc = term if acc is None else acc + term      # first tap initializes (no zeros pass)

    # dw BN bias + ReLU (scale already folded into dww).
    acc = jnp.maximum(acc + dwb_ref[...].astype(mac_dtype), 0.0)

    # ---- pointwise 1x1 conv on the MXU + BN bias + ReLU epilogue -------------
    # Single reshape to the GEMM layout (a view whenever Wo is a sublane multiple).
    y = acc.reshape(Ho * Wo, cin).astype(pww_ref.dtype)
    out = jnp.dot(y, pww_ref[...], preferred_element_type=jnp.float32)
    out = jnp.maximum(out + pwb_ref[...].astype(jnp.float32), 0.0)
    o_ref[...] = out.astype(o_ref.dtype)                   # lane-dense 2-D store


# ---------------------------------------------------------------------------
# Wrappers
# ---------------------------------------------------------------------------

@functools.partial(jax.jit, static_argnames=("stride", "out_channels"))
def dws_conv_block_forward_nhwc(x_nhwc, params, *, stride, out_channels):
    """Kernel-native path: NHWC input -> NHWC bf16 output. Chain blocks through this."""
    if stride not in (1, 2):
        raise ValueError("MobileNet DwsConvBlock uses stride 1 or 2")
    n, h, w, cin = x_nhwc.shape
    ho = (h - 1) // stride + 1
    wo = (w - 1) // stride + 1
    hp, wp = h + 2, w + 2
    coutp = params["pw_w"].shape[1]

    # One fused XLA op: cast to bf16 + conv padding=1 halo (halves input HBM/VMEM traffic).
    xp = jnp.pad(x_nhwc.astype(jnp.bfloat16), ((0, 0), (1, 1), (1, 1), (0, 0)))

    out2d = pl.pallas_call(
        functools.partial(_dws_fused_kernel, stride=stride, Ho=ho, Wo=wo,
                          mac_dtype=_DW_MAC_DTYPE),
        out_shape=jax.ShapeDtypeStruct((n, ho * wo, coutp), jnp.bfloat16),
        grid=(n,),
        in_specs=[
            pl.BlockSpec((None, hp, wp, cin), lambda i: (i, 0, 0, 0)),
            pl.BlockSpec((9, cin), lambda i: (0, 0)),
            pl.BlockSpec((1, cin), lambda i: (0, 0)),
            pl.BlockSpec((cin, coutp), lambda i: (0, 0)),
            pl.BlockSpec((1, coutp), lambda i: (0, 0)),
        ],
        out_specs=pl.BlockSpec((None, ho * wo, coutp), lambda i: (i, 0, 0)),
        compiler_params=pltpu.CompilerParams(
            dimension_semantics=("parallel",),
            vmem_limit_bytes=_vmem_limit_bytes(hp, wp, cin, ho * wo, coutp),
        ),
    )(xp, params["dw_w"], params["dw_b"], params["pw_w"], params["pw_b"])

    # (N, Ho*Wo, Coutp) -> (N, Ho, Wo, Cout); reshape + channel un-padding stay outside the kernel.
    return out2d.reshape(n, ho, wo, coutp)[..., :out_channels]


@functools.partial(jax.jit, static_argnames=("stride", "out_channels"))
def dws_conv_block_forward(x_nchw, params, *, stride, out_channels):
    """PyTorch-layout parity wrapper: NCHW f32 -> NCHW f32 (adds layout round-trips; prefer the
    NHWC bf16 path when blocks are chained)."""
    x = jnp.transpose(x_nchw, (0, 2, 3, 1))
    y = dws_conv_block_forward_nhwc(x, params, stride=stride, out_channels=out_channels)
    return jnp.transpose(y, (0, 3, 1, 2)).astype(jnp.float32)


# ---------------------------------------------------------------------------
# Parameters (PyTorch-layout raw params -> folded/padded kernel params)
# ---------------------------------------------------------------------------

def init_dws_block_params(key, in_channels, out_channels):
    """Raw parameters in PyTorch-like layout, with non-trivial BN stats (eval mode)."""
    ks = jax.random.split(key, 10)
    p = {}
    p["dw_w"] = jax.random.normal(ks[0], (in_channels, 3, 3), jnp.float32) * jnp.sqrt(2.0 / 9.0)
    p["pw_w"] = (jax.random.normal(ks[1], (out_channels, in_channels), jnp.float32)
                 * jnp.sqrt(2.0 / in_channels))
    p["dw_gamma"] = 1.0 + 0.1 * jax.random.normal(ks[2], (in_channels,), jnp.float32)
    p["dw_beta"] = 0.1 * jax.random.normal(ks[3], (in_channels,), jnp.float32)
    p["dw_mean"] = 0.1 * jax.random.normal(ks[4], (in_channels,), jnp.float32)
    p["dw_var"] = 1.0 + 0.1 * jnp.abs(jax.random.normal(ks[5], (in_channels,), jnp.float32))
    p["pw_gamma"] = 1.0 + 0.1 * jax.random.normal(ks[6], (out_channels,), jnp.float32)
    p["pw_beta"] = 0.1 * jax.random.normal(ks[7], (out_channels,), jnp.float32)
    p["pw_mean"] = 0.1 * jax.random.normal(ks[8], (out_channels,), jnp.float32)
    p["pw_var"] = 1.0 + 0.1 * jnp.abs(jax.random.normal(ks[9], (out_channels,), jnp.float32))
    return p


def _fold_bn(gamma, beta, mean, var, eps=BN_EPS):
    scale = gamma / jnp.sqrt(var + eps)
    bias = beta - mean * scale
    return scale, bias


def prepare_dws_params(raw, lane=128):
    """Fold eval-mode BN into the conv weights and lay out / lane-pad for the fused kernel."""
    cin = raw["dw_w"].shape[0]
    cout = raw["pw_w"].shape[0]
    coutp = _round_up(cout, lane)

    dw_scale, dw_bias = _fold_bn(raw["dw_gamma"], raw["dw_beta"], raw["dw_mean"], raw["dw_var"])
    # depthwise weight (Cin, 3, 3) -> (9, Cin), BN scale folded in
    dw_w = jnp.transpose(raw["dw_w"], (1, 2, 0)).reshape(9, cin) * dw_scale[None, :]

    pw_scale, pw_bias = _fold_bn(raw["pw_gamma"], raw["pw_beta"], raw["pw_mean"], raw["pw_var"])
    # pointwise weight (Cout, Cin) -> (Cin, Cout), BN scale folded in, lane-padded to Coutp
    pw_w = jnp.transpose(raw["pw_w"], (1, 0)) * pw_scale[None, :]
    pw_w = jnp.pad(pw_w, ((0, 0), (0, coutp - cout)))
    pw_b = jnp.pad(pw_bias, (0, coutp - cout))

    return {
        "dw_w": dw_w.astype(jnp.bfloat16),                       # (9, Cin)
        "dw_b": dw_bias.reshape(1, cin).astype(jnp.float32),     # (1, Cin)
        "pw_w": pw_w.astype(jnp.bfloat16),                       # (Cin, Coutp)
        "pw_b": pw_b.reshape(1, coutp).astype(jnp.float32),      # (1, Coutp)
    }


# ---------------------------------------------------------------------------
# Pure-JAX reference (f32) for validation
# ---------------------------------------------------------------------------

def dws_conv_block_reference(x_nchw, raw, stride):
    x = x_nchw.astype(jnp.float32)
    cin = raw["dw_w"].shape[0]

    def bn(t, g, b, m, v):
        s = g / jnp.sqrt(v + BN_EPS)
        return (t - m[None, :, None, None]) * s[None, :, None, None] + b[None, :, None, None]

    y = jax.lax.conv_general_dilated(
        x, raw["dw_w"][:, None, :, :], window_strides=(stride, stride),
        padding=((1, 1), (1, 1)), feature_group_count=cin,
        dimension_numbers=("NCHW", "OIHW", "NCHW"))
    y = jnp.maximum(bn(y, raw["dw_gamma"], raw["dw_beta"], raw["dw_mean"], raw["dw_var"]), 0.0)

    z = jnp.einsum("nchw,oc->nohw", y, raw["pw_w"])
    z = jnp.maximum(bn(z, raw["pw_gamma"], raw["pw_beta"], raw["pw_mean"], raw["pw_var"]), 0.0)
    return z


# ---------------------------------------------------------------------------

if __name__ == "__main__":
    key = jax.random.PRNGKey(0)
    k_x, k_a, k_b = jax.random.split(key, 3)

    batch, in_c, out_c, hw = 2, 32, 64, 16
    x = jax.random.normal(k_x, (batch, in_c, hw, hw), jnp.float32)   # NCHW like PyTorch

    # bf16 weights/activations (+ bf16 depthwise MACs on v6e/v7x) vs f32 reference:
    # expected max abs error ~5e-2; validated with rtol=5e-2, atol=1e-1.
    rtol, atol = 5e-2, 1e-1

    for name, stride, k in (("stride1", 1, k_a), ("stride2", 2, k_b)):
        raw = init_dws_block_params(k, in_c, out_c)
        params = prepare_dws_params(raw)

        out = dws_conv_block_forward(x, params, stride=stride, out_channels=out_c)
        out = jax.block_until_ready(out)

        ref = dws_conv_block_reference(x, raw, stride)
        assert out.shape == ref.shape == (batch, out_c, hw // stride, hw // stride), (name, out.shape)
        assert bool(jnp.all(jnp.isfinite(out))), name
        max_err = float(jnp.max(jnp.abs(out - ref)))
        assert bool(jnp.allclose(out, ref, rtol=rtol, atol=atol)), (name, max_err)

    print("KERNEL_OK")
</pallas_src>

<mosaic_0001>
module attributes {stable_mosaic.version = 11 : i64} {
  func.func @_dws_fused_kernel(%arg0: i32, %arg1: memref<1x18x18x32xbf16, #tpu.memory_space<vmem>>, %arg2: memref<9x32xbf16, #tpu.memory_space<vmem>>, %arg3: memref<1x32xf32, #tpu.memory_space<vmem>>, %arg4: memref<32x128xbf16, #tpu.memory_space<vmem>>, %arg5: memref<1x128xf32, #tpu.memory_space<vmem>>, %arg6: memref<1x256x128xbf16, #tpu.memory_space<vmem>>) attributes {dimension_semantics = [#tpu.dimension_semantics<parallel>], iteration_bounds = array<i64: 2>, scalar_prefetch = 0 : i64, scratch_operands = 0 : i64, tpu.core_type = #tpu.core_type<tc>, window_params = [{transform_indices = @transform_0, window_bounds = array<i64: 1, 18, 18, 32>}, {pipeline_mode = #tpu.pipeline_mode<synchronous>, transform_indices = @transform_1, window_bounds = array<i64: 9, 32>}, {pipeline_mode = #tpu.pipeline_mode<synchronous>, transform_indices = @transform_2, window_bounds = array<i64: 1, 32>}, {pipeline_mode = #tpu.pipeline_mode<synchronous>, transform_indices = @transform_3, window_bounds = array<i64: 32, 128>}, {pipeline_mode = #tpu.pipeline_mode<synchronous>, transform_indices = @transform_4, window_bounds = array<i64: 1, 128>}, {transform_indices = @transform_5, window_bounds = array<i64: 1, 256, 128>}]} {
    %c0 = arith.constant 0 : index
    %c0_0 = arith.constant 0 : index
    %0 = vector.load %arg2[%c0, %c0_0] : memref<9x32xbf16, #tpu.memory_space<vmem>>, vector<9x32xbf16>
    %1 = arith.extf %0 : vector<9x32xbf16> to vector<9x32xf32>
    %c0_1 = arith.constant 0 : index
    %c0_2 = arith.constant 0 : index
    %c0_3 = arith.constant 0 : index
    %c0_4 = arith.constant 0 : index
    %2 = vector.load %arg1[%c0_1, %c0_2, %c0_3, %c0_4] : memref<1x18x18x32xbf16, #tpu.memory_space<vmem>>, vector<1x16x16x32xbf16>
    %3 = vector.shape_cast %2 : vector<1x16x16x32xbf16> to vector<16x16x32xbf16>
    %c0_5 = arith.constant 0 : index
    %c0_6 = arith.constant 0 : index
    %c1 = arith.constant 1 : index
    %c0_7 = arith.constant 0 : index
    %4 = vector.load %arg1[%c0_5, %c0_6, %c1, %c0_7] : memref<1x18x18x32xbf16, #tpu.memory_space<vmem>>, vector<1x16x16x32xbf16>
    %5 = vector.shape_cast %4 : vector<1x16x16x32xbf16> to vector<16x16x32xbf16>
    %c0_8 = arith.constant 0 : index
    %c0_9 = arith.constant 0 : index
    %c2 = arith.constant 2 : index
    %c0_10 = arith.constant 0 : index
    %6 = vector.load %arg1[%c0_8, %c0_9, %c2, %c0_10] : memref<1x18x18x32xbf16, #tpu.memory_space<vmem>>, vector<1x16x16x32xbf16>
    %7 = vector.shape_cast %6 : vector<1x16x16x32xbf16> to vector<16x16x32xbf16>
    %8 = arith.extf %3 : vector<16x16x32xbf16> to vector<16x16x32xf32>
    %9 = vector.extract_strided_slice %1 {offsets = [0, 0], sizes = [1, 32], strides = [1, 1]} : vector<9x32xf32> to vector<1x32xf32>
    %10 = vector.shape_cast %9 : vector<1x32xf32> to vector<32xf32>
    %11 = vector.shape_cast %10 : vector<32xf32> to vector<1x1x32xf32>
    %12 = vector.broadcast %11 : vector<1x1x32xf32> to vector<16x16x32xf32>
    %13 = arith.mulf %8, %12 : vector<16x16x32xf32>
    %14 = arith.extf %5 : vector<16x16x32xbf16> to vector<16x16x32xf32>
    %15 = vector.extract_strided_slice %1 {offsets = [1, 0], sizes = [1, 32], strides = [1, 1]} : vector<9x32xf32> to vector<1x32xf32>
    %16 = vector.shape_cast %15 : vector<1x32xf32> to vector<32xf32>
    %17 = vector.shape_cast %16 : vector<32xf32> to vector<1x1x32xf32>
    %18 = vector.broadcast %17 : vector<1x1x32xf32> to vector<16x16x32xf32>
    %19 = arith.mulf %14, %18 : vector<16x16x32xf32>
    %20 = arith.addf %13, %19 : vector<16x16x32xf32>
    %21 = arith.extf %7 : vector<16x16x32xbf16> to vector<16x16x32xf32>
    %22 = vector.extract_strided_slice %1 {offsets = [2, 0], sizes = [1, 32], strides = [1, 1]} : vector<9x32xf32> to vector<1x32xf32>
    %23 = vector.shape_cast %22 : vector<1x32xf32> to vector<32xf32>
    %24 = vector.shape_cast %23 : vector<32xf32> to vector<1x1x32xf32>
    %25 = vector.broadcast %24 : vector<1x1x32xf32> to vector<16x16x32xf32>
    %26 = arith.mulf %21, %25 : vector<16x16x32xf32>
    %27 = arith.addf %20, %26 : vector<16x16x32xf32>
    %c0_11 = arith.constant 0 : index
    %c1_12 = arith.constant 1 : index
    %c0_13 = arith.constant 0 : index
    %c0_14 = arith.constant 0 : index
    %28 = vector.load %arg1[%c0_11, %c1_12, %c0_13, %c0_14] : memref<1x18x18x32xbf16, #tpu.memory_space<vmem>>, vector<1x16x16x32xbf16>
    %29 = vector.shape_cast %28 : vector<1x16x16x32xbf16> to vector<16x16x32xbf16>
    %c0_15 = arith.constant 0 : index
    %c1_16 = arith.constant 1 : index
    %c1_17 = arith.constant 1 : index
    %c0_18 = arith.constant 0 : index
    %30 = vector.load %arg1[%c0_15, %c1_16, %c1_17, %c0_18] : memref<1x18x18x32xbf16, #tpu.memory_space<vmem>>, vector<1x16x16x32xbf16>
    %31 = vector.shape_cast %30 : vector<1x16x16x32xbf16> to vector<16x16x32xbf16>
    %c0_19 = arith.constant 0 : index
    %c1_20 = arith.constant 1 : index
    %c2_21 = arith.constant 2 : index
    %c0_22 = arith.constant 0 : index
    %32 = vector.load %arg1[%c0_19, %c1_20, %c2_21, %c0_22] : memref<1x18x18x32xbf16, #tpu.memory_space<vmem>>, vector<1x16x16x32xbf16>
    %33 = vector.shape_cast %32 : vector<1x16x16x32xbf16> to vector<16x16x32xbf16>
    %34 = arith.extf %29 : vector<16x16x32xbf16> to vector<16x16x32xf32>
    %35 = vector.extract_strided_slice %1 {offsets = [3, 0], sizes = [1, 32], strides = [1, 1]} : vector<9x32xf32> to vector<1x32xf32>
    %36 = vector.shape_cast %35 : vector<1x32xf32> to vector<32xf32>
    %37 = vector.shape_cast %36 : vector<32xf32> to vector<1x1x32xf32>
    %38 = vector.broadcast %37 : vector<1x1x32xf32> to vector<16x16x32xf32>
    %39 = arith.mulf %34, %38 : vector<16x16x32xf32>
    %40 = arith.addf %27, %39 : vector<16x16x32xf32>
    %41 = arith.extf %31 : vector<16x16x32xbf16> to vector<16x16x32xf32>
    %42 = vector.extract_strided_slice %1 {offsets = [4, 0], sizes = [1, 32], strides = [1, 1]} : vector<9x32xf32> to vector<1x32xf32>
    %43 = vector.shape_cast %42 : vector<1x32xf32> to vector<32xf32>
    %44 = vector.shape_cast %43 : vector<32xf32> to vector<1x1x32xf32>
    %45 = vector.broadcast %44 : vector<1x1x32xf32> to vector<16x16x32xf32>
    %46 = arith.mulf %41, %45 : vector<16x16x32xf32>
    %47 = arith.addf %40, %46 : vector<16x16x32xf32>
    %48 = arith.extf %33 : vector<16x16x32xbf16> to vector<16x16x32xf32>
    %49 = vector.extract_strided_slice %1 {offsets = [5, 0], sizes = [1, 32], strides = [1, 1]} : vector<9x32xf32> to vector<1x32xf32>
    %50 = vector.shape_cast %49 : vector<1x32xf32> to vector<32xf32>
    %51 = vector.shape_cast %50 : vector<32xf32> to vector<1x1x32xf32>
    %52 = vector.broadcast %51 : vector<1x1x32xf32> to vector<16x16x32xf32>
    %53 = arith.mulf %48, %52 : vector<16x16x32xf32>
    %54 = arith.addf %47, %53 : vector<16x16x32xf32>
    %c0_23 = arith.constant 0 : index
    %c2_24 = arith.constant 2 : index
    %c0_25 = arith.constant 0 : index
    %c0_26 = arith.constant 0 : index
    %55 = vector.load %arg1[%c0_23, %c2_24, %c0_25, %c0_26] : memref<1x18x18x32xbf16, #tpu.memory_space<vmem>>, vector<1x16x16x32xbf16>
    %56 = vector.shape_cast %55 : vector<1x16x16x32xbf16> to vector<16x16x32xbf16>
    %c0_27 = arith.constant 0 : index
    %c2_28 = arith.constant 2 : index
    %c1_29 = arith.constant 1 : index
    %c0_30 = arith.constant 0 : index
    %57 = vector.load %arg1[%c0_27, %c2_28, %c1_29, %c0_30] : memref<1x18x18x32xbf16, #tpu.memory_space<vmem>>, vector<1x16x16x32xbf16>
    %58 = vector.shape_cast %57 : vector<1x16x16x32xbf16> to vector<16x16x32xbf16>
    %c0_31 = arith.constant 0 : index
    %c2_32 = arith.constant 2 : index
    %c2_33 = arith.constant 2 : index
    %c0_34 = arith.constant 0 : index
    %59 = vector.load %arg1[%c0_31, %c2_32, %c2_33, %c0_34] : memref<1x18x18x32xbf16, #tpu.memory_space<vmem>>, vector<1x16x16x32xbf16>
    %60 = vector.shape_cast %59 : vector<1x16x16x32xbf16> to vector<16x16x32xbf16>
    %61 = arith.extf %56 : vector<16x16x32xbf16> to vector<16x16x32xf32>
    %62 = vector.extract_strided_slice %1 {offsets = [6, 0], sizes = [1, 32], strides = [1, 1]} : vector<9x32xf32> to vector<1x32xf32>
    %63 = vector.shape_cast %62 : vector<1x32xf32> to vector<32xf32>
    %64 = vector.shape_cast %63 : vector<32xf32> to vector<1x1x32xf32>
    %65 = vector.broadcast %64 : vector<1x1x32xf32> to vector<16x16x32xf32>
    %66 = arith.mulf %61, %65 : vector<16x16x32xf32>
    %67 = arith.addf %54, %66 : vector<16x16x32xf32>
    %68 = arith.extf %58 : vector<16x16x32xbf16> to vector<16x16x32xf32>
    %69 = vector.extract_strided_slice %1 {offsets = [7, 0], sizes = [1, 32], strides = [1, 1]} : vector<9x32xf32> to vector<1x32xf32>
    %70 = vector.shape_cast %69 : vector<1x32xf32> to vector<32xf32>
    %71 = vector.shape_cast %70 : vector<32xf32> to vector<1x1x32xf32>
    %72 = vector.broadcast %71 : vector<1x1x32xf32> to vector<16x16x32xf32>
    %73 = arith.mulf %68, %72 : vector<16x16x32xf32>
    %74 = arith.addf %67, %73 : vector<16x16x32xf32>
    %75 = arith.extf %60 : vector<16x16x32xbf16> to vector<16x16x32xf32>
    %76 = vector.extract_strided_slice %1 {offsets = [8, 0], sizes = [1, 32], strides = [1, 1]} : vector<9x32xf32> to vector<1x32xf32>
    %77 = vector.shape_cast %76 : vector<1x32xf32> to vector<32xf32>
    %78 = vector.shape_cast %77 : vector<32xf32> to vector<1x1x32xf32>
    %79 = vector.broadcast %78 : vector<1x1x32xf32> to vector<16x16x32xf32>
    %80 = arith.mulf %75, %79 : vector<16x16x32xf32>
    %81 = arith.addf %74, %80 : vector<16x16x32xf32>
    %c0_35 = arith.constant 0 : index
    %c0_36 = arith.constant 0 : index
    %82 = vector.load %arg3[%c0_35, %c0_36] : memref<1x32xf32, #tpu.memory_space<vmem>>, vector<1x32xf32>
    %83 = vector.shape_cast %82 : vector<1x32xf32> to vector<1x1x32xf32>
    %84 = vector.broadcast %83 : vector<1x1x32xf32> to vector<16x16x32xf32>
    %85 = arith.addf %81, %84 : vector<16x16x32xf32>
    %cst = arith.constant 0.000000e+00 : f32
    %86 = vector.broadcast %cst : f32 to vector<16x16x32xf32>
    %87 = arith.maximumf %85, %86 : vector<16x16x32xf32>
    %88 = vector.shape_cast %87 : vector<16x16x32xf32> to vector<256x32xf32>
    %89 = arith.truncf %88 : vector<256x32xf32> to vector<256x32xbf16>
    %c0_37 = arith.constant 0 : index
    %c0_38 = arith.constant 0 : index
    %90 = vector.load %arg4[%c0_37, %c0_38] : memref<32x128xbf16, #tpu.memory_space<vmem>>, vector<32x128xbf16>
    %cst_39 = arith.constant dense<0.000000e+00> : vector<256x128xf32>
    %91 = tpu.matmul %89, %90, %cst_39 {dimension_numbers = #tpu.dot_dimension_numbers<[1], [0], [0], [1], [0, 0, 1, 1], [], []>} : vector<256x32xbf16>, vector<32x128xbf16>, vector<256x128xf32> -> vector<256x128xf32>
    %c0_40 = arith.constant 0 : index
    %c0_41 = arith.constant 0 : index
    %92 = vector.load %arg5[%c0_40, %c0_41] : memref<1x128xf32, #tpu.memory_space<vmem>>, vector<1x128xf32>
    %93 = vector.broadcast %92 : vector<1x128xf32> to vector<256x128xf32>
    %94 = arith.addf %91, %93 : vector<256x128xf32>
    %cst_42 = arith.constant 0.000000e+00 : f32
    %95 = vector.broadcast %cst_42 : f32 to vector<256x128xf32>
    %96 = arith.maximumf %94, %95 : vector<256x128xf32>
    %97 = arith.truncf %96 : vector<256x128xf32> to vector<256x128xbf16>
    %c0_43 = arith.constant 0 : index
    %c0_44 = arith.constant 0 : index
    %c0_45 = arith.constant 0 : index
    %98 = vector.load %arg6[%c0_43, %c0_44, %c0_45] : memref<1x256x128xbf16, #tpu.memory_space<vmem>>, vector<1x256x128xbf16>
    %99 = vector.shape_cast %98 : vector<1x256x128xbf16> to vector<256x128xbf16>
    %100 = vector.shape_cast %97 : vector<256x128xbf16> to vector<1x256x128xbf16>
    tpu.vector_store %arg6[%c0_43, %c0_44, %c0_45], %100 {strides = array<i32>} : memref<1x256x128xbf16, #tpu.memory_space<vmem>>, vector<1x256x128xbf16>,
    return
  }
  func.func @transform_0(%arg0: i32) -> (i32, i32, i32, i32) {
    %c0_i32 = arith.constant 0 : i32
    %c0_i32_0 = arith.constant 0 : i32
    %c0_i32_1 = arith.constant 0 : i32
    %c0_i32_2 = arith.constant 0 : i32
    return %arg0, %c0_i32, %c0_i32_0, %c0_i32_1 : i32, i32, i32, i32
  }
  func.func @transform_1(%arg0: i32) -> (i32, i32) {
    %c0_i32 = arith.constant 0 : i32
    %c0_i32_0 = arith.constant 0 : i32
    %c0_i32_1 = arith.constant 0 : i32
    return %c0_i32, %c0_i32_0 : i32, i32
  }
  func.func @transform_2(%arg0: i32) -> (i32, i32) {
    %c0_i32 = arith.constant 0 : i32
    %c0_i32_0 = arith.constant 0 : i32
    %c0_i32_1 = arith.constant 0 : i32
    return %c0_i32, %c0_i32_0 : i32, i32
  }
  func.func @transform_3(%arg0: i32) -> (i32, i32) {
    %c0_i32 = arith.constant 0 : i32
    %c0_i32_0 = arith.constant 0 : i32
    %c0_i32_1 = arith.constant 0 : i32
    return %c0_i32, %c0_i32_0 : i32, i32
  }
  func.func @transform_4(%arg0: i32) -> (i32, i32) {
    %c0_i32 = arith.constant 0 : i32
    %c0_i32_0 = arith.constant 0 : i32
    %c0_i32_1 = arith.constant 0 : i32
    return %c0_i32, %c0_i32_0 : i32, i32
  }
  func.func @transform_5(%arg0: i32) -> (i32, i32, i32) {
    %c0_i32 = arith.constant 0 : i32
    %c0_i32_0 = arith.constant 0 : i32
    %c0_i32_1 = arith.constant 0 : i32
    return %arg0, %c0_i32, %c0_i32_0 : i32, i32, i32
  }
}

</mosaic_0001>

<llo_original>
// kernel: dws_conv_block_forward_nhwc.1
$region0: #{dws_conv_block_forward_nhwc.1}
  #allocation0 [shape = 'u32[]', space=smem, size = 0x4, offset = 0x4, fixed_abs, tag = 'smem constant byte address 0x4 - core index']
  #allocation1 [shape = 'u32[144,128]{1,0:T(1,128)}', space=vmem, size = 0x12000, scoped, tag = 'internal scratch']
  %s0 = inlined_call_operand.vmem [shape: bf16[2,18,18,32], index: 0, kind: input, shape index: {}]
  %s1 = inlined_call_operand.vmem [shape: bf16[9,32], index: 1, kind: input, shape index: {}]
  %s2 = inlined_call_operand.vmem [shape: f32[1,32], index: 2, kind: input, shape index: {}]
  %s3 = inlined_call_operand.vmem [shape: bf16[32,128], index: 3, kind: input, shape index: {}]
  %s4 = inlined_call_operand.vmem [shape: f32[1,128], index: 4, kind: input, shape index: {}]
  %s5 = inlined_call_operand.hbm [shape: bf16[2,256,128], index: 5, kind: output, shape index: {}]
  %s6 = sld [smem:[#allocation0]]
  $region53: #{dws_conv_block_forward_nhwc.1} parent=0
    _
  %s8 = ssub.s32 1, %s6
  %s9 = scalar_select 0, %s8, %s6
  $region1: #{dws_conv_block_forward_nhwc.1} parent=0
    #allocation2 [shape = 'u8[131072]{0}', space=vmem, size = 0x20000, scoped, tag = 'output window, operand 0']
    #allocation3 [shape = 's32[2]{0}', space=sflag, size = 0x8, scoped, tag = 'scoped memory for dws_conv_block_forward_nhwc.1']
    %10 = vsyncpa [#allocation3], 0
    %s11 = scalar_lea.sflag [#allocation3], 1
    %12 = vsyncpa %s11, 0
    loop: start=0, step=1, limit=4
    $region2: #{dws_conv_block_forward_nhwc.1} parent=1 // loop_pre_header
      _
    $region3: #{dws_conv_block_forward_nhwc.1} parent=1 // loop_header
      %s14 = sphi 0, %s18
      %p15 = scmp.ge.s32.totalorder %s14, 4
      %s24 = sphi 0, %s26
      %s27 = sphi 0, %s24
      %s28 = sphi 0, %s27
      %s44 = sphi 0, %s28
      %s48 = sphi 0, %s48
      %s50 = sphi 0, %s48
      %s51 = sphi 0, %s50
      %s65 = sphi 0, %s51
      %s69 = sphi 0, %s69
      %s71 = sphi 0, %s69
      %s72 = sphi 0, %s71
      %s86 = sphi 0, %s72
      %s90 = sphi 0, %s90
      %s92 = sphi 0, %s90
      %s93 = sphi 0, %s92
      %s107 = sphi 0, %s93
      %s111 = sphi 0, %s111
      %s113 = sphi 0, %s111
      %s114 = sphi 0, %s113
      %s128 = sphi 0, %s114
      %s134 = sphi 0, %s136
      %s137 = sphi 0, %s134
      %s138 = sphi 0, %s137
      %s154 = sphi 0, %s138
    $region4: #{dws_conv_block_forward_nhwc.1} parent=1 // loop_header_branch
      %17 = sbr.rel (%p15) target = $region8
    $region5: #{dws_conv_block_forward_nhwc.1} parent=1 // loop_body
      %s19 = ssub.s32 %s14, 1
      %s20 = ssub.s32 %s14, 2
      %s21 = sadd.s32 %s14, 1
      %s22 = ssub.s32 %s14, %s21
      %p23 = scmp.eq.s32.totalorder %s22, 0
      %s25 = sadd.s32 %s24, 1
      %s26 = scalar_select %p23, %s24, %s25
      %p29 = pneg %p23
      %p30 = scmp.eq.s32.totalorder %s14, 1
      %p31 = por %p29, %p30
      %p32 = scmp.ne.s32.totalorder %s24, %s27
      %p33 = scmp.eq.s32.totalorder %s14, 0
      %p34 = por %p32, %p33
      %p35 = scmp.ne.s32.totalorder %s24, %s27
      %p36 = scmp.eq.s32.totalorder %s19, 1
      %p37 = por %p35, %p36
      %p38 = scmp.ne.s32.totalorder %s27, %s28
      %p39 = scmp.eq.s32.totalorder %s19, 0
      %p40 = por %p38, %p39
      %p41 = scmp.ne.s32.totalorder %s27, %s28
      %p42 = scmp.eq.s32.totalorder %s20, 1
      %p43 = por %p41, %p42
      %p45 = scmp.ne.s32.totalorder %s28, %s44
      %p46 = scmp.eq.s32.totalorder %s20, 0
      %p47 = por %p45, %p46
      %s49 = sadd.s32 %s48, 1
      %p52 = scmp.eq.s32.totalorder %s14, 1
      %p53 = scmp.ne.s32.totalorder %s48, %s50
      %p54 = scmp.eq.s32.totalorder %s14, 0
      %p55 = por %p53, %p54
      %p56 = scmp.ne.s32.totalorder %s48, %s50
      %p57 = scmp.eq.s32.totalorder %s19, 1
      %p58 = por %p56, %p57
      %p59 = scmp.ne.s32.totalorder %s50, %s51
      %p60 = scmp.eq.s32.totalorder %s19, 0
      %p61 = por %p59, %p60
      %p62 = scmp.ne.s32.totalorder %s50, %s51
      %p63 = scmp.eq.s32.totalorder %s20, 1
      %p64 = por %p62, %p63
      %p66 = scmp.ne.s32.totalorder %s51, %s65
      %p67 = scmp.eq.s32.totalorder %s20, 0
      %p68 = por %p66, %p67
      %s70 = sadd.s32 %s69, 1
      %p73 = scmp.eq.s32.totalorder %s14, 1
      %p74 = scmp.ne.s32.totalorder %s69, %s71
      %p75 = scmp.eq.s32.totalorder %s14, 0
      %p76 = por %p74, %p75
      %p77 = scmp.ne.s32.totalorder %s69, %s71
      %p78 = scmp.eq.s32.totalorder %s19, 1
      %p79 = por %p77, %p78
      %p80 = scmp.ne.s32.totalorder %s71, %s72
      %p81 = scmp.eq.s32.totalorder %s19, 0
      %p82 = por %p80, %p81
      %p83 = scmp.ne.s32.totalorder %s71, %s72
      %p84 = scmp.eq.s32.totalorder %s20, 1
      %p85 = por %p83, %p84
      %p87 = scmp.ne.s32.totalorder %s72, %s86
      %p88 = scmp.eq.s32.totalorder %s20, 0
      %p89 = por %p87, %p88
      %s91 = sadd.s32 %s90, 1
      %p94 = scmp.eq.s32.totalorder %s14, 1
      %p95 = scmp.ne.s32.totalorder %s90, %s92
      %p96 = scmp.eq.s32.totalorder %s14, 0
      %p97 = por %p95, %p96
      %p98 = scmp.ne.s32.totalorder %s90, %s92
      %p99 = scmp.eq.s32.totalorder %s19, 1
      %p100 = por %p98, %p99
      %p101 = scmp.ne.s32.totalorder %s92, %s93
      %p102 = scmp.eq.s32.totalorder %s19, 0
      %p103 = por %p101, %p102
      %p104 = scmp.ne.s32.totalorder %s92, %s93
      %p105 = scmp.eq.s32.totalorder %s20, 1
      %p106 = por %p104, %p105
      %p108 = scmp.ne.s32.totalorder %s93, %s107
      %p109 = scmp.eq.s32.totalorder %s20, 0
      %p110 = por %p108, %p109
      %s112 = sadd.s32 %s111, 1
      %p115 = scmp.eq.s32.totalorder %s14, 1
      %p116 = scmp.ne.s32.totalorder %s111, %s113
      %p117 = scmp.eq.s32.totalorder %s14, 0
      %p118 = por %p116, %p117
      %p119 = scmp.ne.s32.totalorder %s111, %s113
      %p120 = scmp.eq.s32.totalorder %s19, 1
      %p121 = por %p119, %p120
      %p122 = scmp.ne.s32.totalorder %s113, %s114
      %p123 = scmp.eq.s32.totalorder %s19, 0
      %p124 = por %p122, %p123
      %p125 = scmp.ne.s32.totalorder %s113, %s114
      %p126 = scmp.eq.s32.totalorder %s20, 1
      %p127 = por %p125, %p126
      %p129 = scmp.ne.s32.totalorder %s114, %s128
      %p130 = scmp.eq.s32.totalorder %s20, 0
      %p131 = por %p129, %p130
      %s132 = ssub.s32 %s14, %s21
      %p133 = scmp.eq.s32.totalorder %s132, 0
      %s135 = sadd.s32 %s134, 1
      %s136 = scalar_select %p133, %s134, %s135
      %p139 = pneg %p133
      %p140 = scmp.eq.s32.totalorder %s14, 1
      %p141 = por %p139, %p140
      %p142 = scmp.ne.s32.totalorder %s134, %s137
      %p143 = scmp.eq.s32.totalorder %s14, 0
      %p144 = por %p142, %p143
      %p145 = scmp.ne.s32.totalorder %s134, %s137
      %p146 = scmp.eq.s32.totalorder %s19, 1
      %p147 = por %p145, %p146
      %p148 = scmp.ne.s32.totalorder %s137, %s138
      %p149 = scmp.eq.s32.totalorder %s19, 0
      %p150 = por %p148, %p149
      %p151 = scmp.ne.s32.totalorder %s137, %s138
      %p152 = scmp.eq.s32.totalorder %s20, 1
      %p153 = por %p151, %p152
      %p155 = scmp.ne.s32.totalorder %s138, %s154
      %p156 = scmp.eq.s32.totalorder %s20, 0
      %p157 = por %p155, %p156
      %p158 = scmp.le.s32.totalorder 1, %s14
      %p159 = scmp.lt.s32.totalorder %s14, 3
      %p160 = pnand %p158, %p159
      %p161 = pneg %p160
      // Predicated region
      $region9: #{dws_conv_block_forward_nhwc.1} parent=5 // pred_check
        _
      $region10: #{dws_conv_block_forward_nhwc.1} parent=5 // pred_check_branch
        %163 = sbr.rel (%p160) target = $region12
      $region11: #{dws_conv_block_forward_nhwc.1} parent=5 // pred_region
        %s164 = ssub.s32 %s14, 1
        // Predicated region
        $region13: #{dws_conv_block_forward_nhwc.1} parent=11 // pred_check
          %p165 = pneg %p61
        $region14: #{dws_conv_block_forward_nhwc.1} parent=11 // pred_check_branch
          %167 = sbr.rel (%p165) target = $region16
        $region15: #{dws_conv_block_forward_nhwc.1} parent=11 // pred_region
          _
        $region16: #{dws_conv_block_forward_nhwc.1} parent=11 // pred_fallthru
          _
        // Predicated region
        $region17: #{dws_conv_block_forward_nhwc.1} parent=11 // pred_check
          %p168 = pneg %p82
        $region18: #{dws_conv_block_forward_nhwc.1} parent=11 // pred_check_branch
          %170 = sbr.rel (%p168) target = $region20
        $region19: #{dws_conv_block_forward_nhwc.1} parent=11 // pred_region
          _
        $region20: #{dws_conv_block_forward_nhwc.1} parent=11 // pred_fallthru
          _
        // Predicated region
        $region21: #{dws_conv_block_forward_nhwc.1} parent=11 // pred_check
          %p171 = pneg %p103
        $region22: #{dws_conv_block_forward_nhwc.1} parent=11 // pred_check_branch
          %173 = sbr.rel (%p171) target = $region24
        $region23: #{dws_conv_block_forward_nhwc.1} parent=11 // pred_region
          _
        $region24: #{dws_conv_block_forward_nhwc.1} parent=11 // pred_fallthru
          _
        // Predicated region
        $region25: #{dws_conv_block_forward_nhwc.1} parent=11 // pred_check
          %p174 = pneg %p124
        $region26: #{dws_conv_block_forward_nhwc.1} parent=11 // pred_check_branch
          %176 = sbr.rel (%p174) target = $region28
        $region27: #{dws_conv_block_forward_nhwc.1} parent=11 // pred_region
          _
        $region28: #{dws_conv_block_forward_nhwc.1} parent=11 // pred_fallthru
          _
      $region12: #{dws_conv_block_forward_nhwc.1} parent=5 // pred_fallthru
        _
      %p177 = scmp.lt.s32.totalorder %s14, 2
      // Predicated region
      $region29: #{dws_conv_block_forward_nhwc.1} parent=5 // pred_check
        %p178 = pneg %p177
      $region30: #{dws_conv_block_forward_nhwc.1} parent=5 // pred_check_branch
        %180 = sbr.rel (%p178) target = $region32
      $region31: #{dws_conv_block_forward_nhwc.1} parent=5 // pred_region
        // Predicated region
        $region33: #{dws_conv_block_forward_nhwc.1} parent=31 // pred_check
          %p181 = pneg %p34
        $region34: #{dws_conv_block_forward_nhwc.1} parent=31 // pred_check_branch
          %183 = sbr.rel (%p181) target = $region36
        $region35: #{dws_conv_block_forward_nhwc.1} parent=31 // pred_region
          %p184 = scmp.lt.s32.totalorder %s14, 1
          %s185 = scalar_select %p184, %s14, 1
          %s186 = smul.addr %s185, 54
          %s187 = smul.addr %s186, 4
          %s188 = scalar_lea.vmem %s0, %s187
        $region36: #{dws_conv_block_forward_nhwc.1} parent=31 // pred_fallthru
          _
      $region32: #{dws_conv_block_forward_nhwc.1} parent=5 // pred_fallthru
        _
      %p189 = scmp.le.s32.totalorder 1, %s14
      %p190 = scmp.lt.s32.totalorder %s14, 3
      %p191 = pnand %p189, %p190
      %p192 = pneg %p191
      // Predicated region
      $region37: #{dws_conv_block_forward_nhwc.1} parent=5 // pred_check
        _
      $region38: #{dws_conv_block_forward_nhwc.1} parent=5 // pred_check_branch
        %194 = sbr.rel (%p191) target = $region40
      $region39: #{dws_conv_block_forward_nhwc.1} parent=5 // pred_region
        %s195 = ssub.s32 %s14, 1
        %p196 = scmp.lt.s32.totalorder %s19, 1
        %s197 = scalar_select %p196, %s19, 1
        %s198 = smul.addr %s197, 54
        %s199 = smul.addr %s198, 4
        %s200 = scalar_lea.vmem %s0, %s199
        %p201 = pneg %p40
        %p202 = pneg %p37
        %p203 = pneg %p61
        %p204 = pneg %p58
        %p205 = pneg %p82
        %p206 = pneg %p79
        %p207 = pneg %p103
        %p208 = pneg %p100
        %p209 = pneg %p124
        %p210 = pneg %p121
        %p211 = pneg %p150
        %p212 = pneg %p147
        %s213 = sand.u32 %s137, 1
        %s214 = scalar_lea.sflag [#allocation3], %s213
        %s215 = sand.u32 %s137, 1
        %s216 = smul.addr %s215, 128
        %s217 = scalar_lea.vmem [#allocation2], %s216
        %p218 = scmp.lt.s32.totalorder %s19, 1
        %s219 = scalar_select %p218, %s19, 1
        %s220 = smul.addr %s219, 54
        %s221 = smul.addr %s220, 4
        %s222 = scalar_lea.vmem %s0, %s221
        %v224 = vld [vmem:[%s1] sm:$0xf]
        %v225 = vld [vmem:[%s1 + $0x4] sm:$0x1]
        %v226 = vunpack.c.l.bf16 %v224
        %v227 = vunpack.c.l.bf16 %v225
        %v228 = vld [vmem:[%s222] sm:$0xf]
        %v229 = vld [vmem:[%s222 + $0x4] sm:$0xf]
        %v230 = vld [vmem:[%s222 + $0xc] sm:$0xf]
        %v231 = vld [vmem:[%s222 + $0x10] sm:$0xf]
        %v232 = vld [vmem:[%s222 + $0x18] sm:$0xf]
        %v233 = vld [vmem:[%s222 + $0x1c] sm:$0xf]
        %v234 = vld [vmem:[%s222 + $0x24] sm:$0xf]
        %v235 = vld [vmem:[%s222 + $0x28] sm:$0xf]
        %v236 = vld [vmem:[%s222 + $0x30] sm:$0xf]
        %v237 = vld [vmem:[%s222 + $0x34] sm:$0xf]
        %v238 = vld [vmem:[%s222 + $0x3c] sm:$0xf]
        %v239 = vld [vmem:[%s222 + $0x40] sm:$0xf]
        %v240 = vld [vmem:[%s222 + $0x48] sm:$0xf]
        %v241 = vld [vmem:[%s222 + $0x4c] sm:$0xf]
        %v242 = vld [vmem:[%s222 + $0x54] sm:$0xf]
        %v243 = vld [vmem:[%s222 + $0x58] sm:$0xf]
        %v244 = vld [vmem:[%s222 + $0x60] sm:$0xf]
        %v245 = vld [vmem:[%s222 + $0x64] sm:$0xf]
        %v246 = vld [vmem:[%s222 + $0x6c] sm:$0xf]
        %v247 = vld [vmem:[%s222 + $0x70] sm:$0xf]
        %v248 = vld [vmem:[%s222 + $0x78] sm:$0xf]
        %v249 = vld [vmem:[%s222 + $0x7c] sm:$0xf]
        %v250 = vld [vmem:[%s222 + $0x84] sm:$0xf]
        %v251 = vld [vmem:[%s222 + $0x88] sm:$0xf]
        %v252 = vld [vmem:[%s222 + $0x90] sm:$0xf]
        %v253 = vld [vmem:[%s222 + $0x94] sm:$0xf]
        %v254 = vld [vmem:[%s222 + $0x9c] sm:$0xf]
        %v255 = vld [vmem:[%s222 + $0xa0] sm:$0xf]
        %v256 = vld [vmem:[%s222 + $0xa8] sm:$0xf]
        %v257 = vld [vmem:[%s222 + $0xac] sm:$0xf]
        %v258 = vld [vmem:[%s222 + $0xb4] sm:$0xf]
        %v259 = vld [vmem:[%s222 + $0xb8] sm:$0xf]
        %v260 = vld [vmem:[%s222 + $0x8] sm:$0x1]
        %v261 = vld [vmem:[%s222 + $0x14] sm:$0x1]
        %v262 = vld [vmem:[%s222 + $0x20] sm:$0x1]
        %v263 = vld [vmem:[%s222 + $0x2c] sm:$0x1]
        %v264 = vld [vmem:[%s222 + $0x38] sm:$0x1]
        %v265 = vld [vmem:[%s222 + $0x44] sm:$0x1]
        %v266 = vld [vmem:[%s222 + $0x50] sm:$0x1]
        %v267 = vld [vmem:[%s222 + $0x5c] sm:$0x1]
        %v268 = vld [vmem:[%s222 + $0x68] sm:$0x1]
        %v269 = vld [vmem:[%s222 + $0x74] sm:$0x1]
        %v270 = vld [vmem:[%s222 + $0x80] sm:$0x1]
        %v271 = vld [vmem:[%s222 + $0x8c] sm:$0x1]
        %v272 = vld [vmem:[%s222 + $0x98] sm:$0x1]
        %v273 = vld [vmem:[%s222 + $0xa4] sm:$0x1]
        %v274 = vld [vmem:[%s222 + $0xb0] sm:$0x1]
        %v275 = vld [vmem:[%s222 + $0xbc] sm:$0x1]
        %v276 = vld [vmem:[%s222] sm:$0xe]
        %v277 = vld [vmem:[%s222 + $0xc] sm:$0xe]
        %v278 = vld [vmem:[%s222 + $0x18] sm:$0xe]
        %v279 = vld [vmem:[%s222 + $0x24] sm:$0xe]
        %v280 = vld [vmem:[%s222 + $0x30] sm:$0xe]
        %v281 = vld [vmem:[%s222 + $0x3c] sm:$0xe]
        %v282 = vld [vmem:[%s222 + $0x48] sm:$0xe]
        %v283 = vld [vmem:[%s222 + $0x54] sm:$0xe]
        %v284 = vld [vmem:[%s222 + $0x60] sm:$0xe]
        %v285 = vld [vmem:[%s222 + $0x6c] sm:$0xe]
        %v286 = vld [vmem:[%s222 + $0x78] sm:$0xe]
        %v287 = vld [vmem:[%s222 + $0x84] sm:$0xe]
        %v288 = vld [vmem:[%s222 + $0x90] sm:$0xe]
        %v289 = vld [vmem:[%s222 + $0x9c] sm:$0xe]
        %v290 = vld [vmem:[%s222 + $0xa8] sm:$0xe]
        %v291 = vld [vmem:[%s222 + $0xb4] sm:$0xe]
        %v292 = vunpack.c.l.bf16 %v228
        %v293 = vunpack.c.l.bf16 %v229
        %v294 = vunpack.c.l.bf16 %v230
        %v295 = vunpack.c.l.bf16 %v231
        %v296 = vunpack.c.l.bf16 %v232
        %v297 = vunpack.c.l.bf16 %v233
        %v298 = vunpack.c.l.bf16 %v234
        %v299 = vunpack.c.l.bf16 %v235
        %v300 = vunpack.c.l.bf16 %v236
        %v301 = vunpack.c.l.bf16 %v237
        %v302 = vunpack.c.l.bf16 %v238
        %v303 = vunpack.c.l.bf16 %v239
        %v304 = vunpack.c.l.bf16 %v240
        %v305 = vunpack.c.l.bf16 %v241
        %v306 = vunpack.c.l.bf16 %v242
        %v307 = vunpack.c.l.bf16 %v243
        %v308 = vunpack.c.l.bf16 %v244
        %v309 = vunpack.c.l.bf16 %v245
        %v310 = vunpack.c.l.bf16 %v246
        %v311 = vunpack.c.l.bf16 %v247
        %v312 = vunpack.c.l.bf16 %v248
        %v313 = vunpack.c.l.bf16 %v249
        %v314 = vunpack.c.l.bf16 %v250
        %v315 = vunpack.c.l.bf16 %v251
        %v316 = vunpack.c.l.bf16 %v252
        %v317 = vunpack.c.l.bf16 %v253
        %v318 = vunpack.c.l.bf16 %v254
        %v319 = vunpack.c.l.bf16 %v255
        %v320 = vunpack.c.l.bf16 %v256
        %v321 = vunpack.c.l.bf16 %v257
        %v322 = vunpack.c.l.bf16 %v258
        %v323 = vunpack.c.l.bf16 %v259
        %v324 = vlaneseq
        %v325 = vshrl.u32 %v324, 7
        %v326 = vsub.s32 0, %v325
        %v327 = vrot.slane %v226, %v326
        %v328 = vmul.f32 %v292, %v327
        %v329 = vmul.f32 %v293, %v327
        %v330 = vmul.f32 %v294, %v327
        %v331 = vmul.f32 %v295, %v327
        %v332 = vmul.f32 %v296, %v327
        %v333 = vmul.f32 %v297, %v327
        %v334 = vmul.f32 %v298, %v327
        %v335 = vmul.f32 %v299, %v327
        %v336 = vmul.f32 %v300, %v327
        %v337 = vmul.f32 %v301, %v327
        %v338 = vmul.f32 %v302, %v327
        %v339 = vmul.f32 %v303, %v327
        %v340 = vmul.f32 %v304, %v327
        %v341 = vmul.f32 %v305, %v327
        %v342 = vmul.f32 %v306, %v327
        %v343 = vmul.f32 %v307, %v327
        %v344 = vmul.f32 %v308, %v327
        %v345 = vmul.f32 %v309, %v327
        %v346 = vmul.f32 %v310, %v327
        %v347 = vmul.f32 %v311, %v327
        %v348 = vmul.f32 %v312, %v327
        %v349 = vmul.f32 %v313, %v327
        %v350 = vmul.f32 %v314, %v327
        %v351 = vmul.f32 %v315, %v327
        %v352 = vmul.f32 %v316, %v327
        %v353 = vmul.f32 %v317, %v327
        %v354 = vmul.f32 %v318, %v327
        %v355 = vmul.f32 %v319, %v327
        %v356 = vmul.f32 %v320, %v327
        %v357 = vmul.f32 %v321, %v327
        %v358 = vmul.f32 %v322, %v327
        %v359 = vmul.f32 %v323, %v327
        %v360 = vunpack.c.l.bf16 %v260
        %v361 = vunpack.c.l.bf16 %v261
        %v362 = vunpack.c.l.bf16 %v262
        %v363 = vunpack.c.l.bf16 %v263
        %v364 = vunpack.c.l.bf16 %v264
        %v365 = vunpack.c.l.bf16 %v265
        %v366 = vunpack.c.l.bf16 %v266
        %v367 = vunpack.c.l.bf16 %v267
        %v368 = vunpack.c.l.bf16 %v268
        %v369 = vunpack.c.l.bf16 %v269
        %v370 = vunpack.c.l.bf16 %v270
        %v371 = vunpack.c.l.bf16 %v271
        %v372 = vunpack.c.l.bf16 %v272
        %v373 = vunpack.c.l.bf16 %v273
        %v374 = vunpack.c.l.bf16 %v274
        %v375 = vunpack.c.l.bf16 %v275
        %v376 = vlaneseq
        %v377 = vshrl.u32 %v376, 7
        %v378 = vsub.s32 1, %v377
        %v379 = vrot.slane %v226, %v378
        %v380 = vmul.f32 %v292, %v379
        %v381 = vmul.f32 %v293, %v379
        %v382 = vmul.f32 %v360, %v379
        %v383 = vmul.f32 %v294, %v379
        %v384 = vmul.f32 %v295, %v379
        %v385 = vmul.f32 %v361, %v379
        %v386 = vmul.f32 %v296, %v379
        %v387 = vmul.f32 %v297, %v379
        %v388 = vmul.f32 %v362, %v379
        %v389 = vmul.f32 %v298, %v379
        %v390 = vmul.f32 %v299, %v379
        %v391 = vmul.f32 %v363, %v379
        %v392 = vmul.f32 %v300, %v379
        %v393 = vmul.f32 %v301, %v379
        %v394 = vmul.f32 %v364, %v379
        %v395 = vmul.f32 %v302, %v379
        %v396 = vmul.f32 %v303, %v379
        %v397 = vmul.f32 %v365, %v379
        %v398 = vmul.f32 %v304, %v379
        %v399 = vmul.f32 %v305, %v379
        %v400 = vmul.f32 %v366, %v379
        %v401 = vmul.f32 %v306, %v379
        %v402 = vmul.f32 %v307, %v379
        %v403 = vmul.f32 %v367, %v379
        %v404 = vmul.f32 %v308, %v379
        %v405 = vmul.f32 %v309, %v379
        %v406 = vmul.f32 %v368, %v379
        %v407 = vmul.f32 %v310, %v379
        %v408 = vmul.f32 %v311, %v379
        %v409 = vmul.f32 %v369, %v379
        %v410 = vmul.f32 %v312, %v379
        %v411 = vmul.f32 %v313, %v379
        %v412 = vmul.f32 %v370, %v379
        %v413 = vmul.f32 %v314, %v379
        %v414 = vmul.f32 %v315, %v379
        %v415 = vmul.f32 %v371, %v379
        %v416 = vmul.f32 %v316, %v379
        %v417 = vmul.f32 %v317, %v379
        %v418 = vmul.f32 %v372, %v379
        %v419 = vmul.f32 %v318, %v379
        %v420 = vmul.f32 %v319, %v379
        %v421 = vmul.f32 %v373, %v379
        %v422 = vmul.f32 %v320, %v379
        %v423 = vmul.f32 %v321, %v379
        %v424 = vmul.f32 %v374, %v379
        %v425 = vmul.f32 %v322, %v379
        %v426 = vmul.f32 %v323, %v379
        %v427 = vmul.f32 %v375, %v379
        %vm476 = vcmask 1046528
        %v477 = vrot.slane %v380, 1
        %v478 = vrot.slane %v381, 1
        %v479 = vsel %vm476, %v477, %v478
        %v480 = vrot.slane %v382, 1
        %v481 = vsel %vm476, %v478, %v480
        %v482 = vrot.slane %v383, 1
        %v483 = vrot.slane %v384, 1
        %v484 = vsel %vm476, %v482, %v483
        %v485 = vrot.slane %v385, 1
        %v486 = vsel %vm476, %v483, %v485
        %v487 = vrot.slane %v386, 1
        %v488 = vrot.slane %v387, 1
        %v489 = vsel %vm476, %v487, %v488
        %v490 = vrot.slane %v388, 1
        %v491 = vsel %vm476, %v488, %v490
        %v492 = vrot.slane %v389, 1
        %v493 = vrot.slane %v390, 1
        %v494 = vsel %vm476, %v492, %v493
        %v495 = vrot.slane %v391, 1
        %v496 = vsel %vm476, %v493, %v495
        %v497 = vrot.slane %v392, 1
        %v498 = vrot.slane %v393, 1
        %v499 = vsel %vm476, %v497, %v498
        %v500 = vrot.slane %v394, 1
        %v501 = vsel %vm476, %v498, %v500
        %v502 = vrot.slane %v395, 1
        %v503 = vrot.slane %v396, 1
        %v504 = vsel %vm476, %v502, %v503
        %v505 = vrot.slane %v397, 1
        %v506 = vsel %vm476, %v503, %v505
        %v507 = vrot.slane %v398, 1
        %v508 = vrot.slane %v399, 1
        %v509 = vsel %vm476, %v507, %v508
        %v510 = vrot.slane %v400, 1
        %v511 = vsel %vm476, %v508, %v510
        %v512 = vrot.slane %v401, 1
        %v513 = vrot.slane %v402, 1
        %v514 = vsel %vm476, %v512, %v513
        %v515 = vrot.slane %v403, 1
        %v516 = vsel %vm476, %v513, %v515
        %v517 = vrot.slane %v404, 1
        %v518 = vrot.slane %v405, 1
        %v519 = vsel %vm476, %v517, %v518
        %v520 = vrot.slane %v406, 1
        %v521 = vsel %vm476, %v518, %v520
        %v522 = vrot.slane %v407, 1
        %v523 = vrot.slane %v408, 1
        %v524 = vsel %vm476, %v522, %v523
        %v525 = vrot.slane %v409, 1
        %v526 = vsel %vm476, %v523, %v525
        %v527 = vrot.slane %v410, 1
        %v528 = vrot.slane %v411, 1
        %v529 = vsel %vm476, %v527, %v528
        %v530 = vrot.slane %v412, 1
        %v531 = vsel %vm476, %v528, %v530
        %v532 = vrot.slane %v413, 1
        %v533 = vrot.slane %v414, 1
        %v534 = vsel %vm476, %v532, %v533
        %v535 = vrot.slane %v415, 1
        %v536 = vsel %vm476, %v533, %v535
        %v537 = vrot.slane %v416, 1
        %v538 = vrot.slane %v417, 1
        %v539 = vsel %vm476, %v537, %v538
        %v540 = vrot.slane %v418, 1
        %v541 = vsel %vm476, %v538, %v540
        %v542 = vrot.slane %v419, 1
        %v543 = vrot.slane %v420, 1
        %v544 = vsel %vm476, %v542, %v543
        %v545 = vrot.slane %v421, 1
        %v546 = vsel %vm476, %v543, %v545
        %v547 = vrot.slane %v422, 1
        %v548 = vrot.slane %v423, 1
        %v549 = vsel %vm476, %v547, %v548
        %v550 = vrot.slane %v424, 1
        %v551 = vsel %vm476, %v548, %v550
        %v552 = vrot.slane %v425, 1
        %v553 = vrot.slane %v426, 1
        %v554 = vsel %vm476, %v552, %v553
        %v555 = vrot.slane %v427, 1
        %v556 = vsel %vm476, %v553, %v555
        %v589 = vadd.f32 %v328, %v479
        %v590 = vadd.f32 %v329, %v481
        %v591 = vadd.f32 %v330, %v484
        %v592 = vadd.f32 %v331, %v486
        %v593 = vadd.f32 %v332, %v489
        %v594 = vadd.f32 %v333, %v491
        %v595 = vadd.f32 %v334, %v494
        %v596 = vadd.f32 %v335, %v496
        %v597 = vadd.f32 %v336, %v499
        %v598 = vadd.f32 %v337, %v501
        %v599 = vadd.f32 %v338, %v504
        %v600 = vadd.f32 %v339, %v506
        %v601 = vadd.f32 %v340, %v509
        %v602 = vadd.f32 %v341, %v511
        %v603 = vadd.f32 %v342, %v514
        %v604 = vadd.f32 %v343, %v516
        %v605 = vadd.f32 %v344, %v519
        %v606 = vadd.f32 %v345, %v521
        %v607 = vadd.f32 %v346, %v524
        %v608 = vadd.f32 %v347, %v526
        %v609 = vadd.f32 %v348, %v529
        %v610 = vadd.f32 %v349, %v531
        %v611 = vadd.f32 %v350, %v534
        %v612 = vadd.f32 %v351, %v536
        %v613 = vadd.f32 %v352, %v539
        %v614 = vadd.f32 %v353, %v541
        %v615 = vadd.f32 %v354, %v544
        %v616 = vadd.f32 %v355, %v546
        %v617 = vadd.f32 %v356, %v549
        %v618 = vadd.f32 %v357, %v551
        %v619 = vadd.f32 %v358, %v554
        %v620 = vadd.f32 %v359, %v556
        %v621 = vunpack.c.l.bf16 %v276
        %v622 = vunpack.c.l.bf16 %v277
        %v623 = vunpack.c.l.bf16 %v278
        %v624 = vunpack.c.l.bf16 %v279
        %v625 = vunpack.c.l.bf16 %v280
        %v626 = vunpack.c.l.bf16 %v281
        %v627 = vunpack.c.l.bf16 %v282
        %v628 = vunpack.c.l.bf16 %v283
        %v629 = vunpack.c.l.bf16 %v284
        %v630 = vunpack.c.l.bf16 %v285
        %v631 = vunpack.c.l.bf16 %v286
        %v632 = vunpack.c.l.bf16 %v287
        %v633 = vunpack.c.l.bf16 %v288
        %v634 = vunpack.c.l.bf16 %v289
        %v635 = vunpack.c.l.bf16 %v290
        %v636 = vunpack.c.l.bf16 %v291
        %v637 = vlaneseq
        %v638 = vshrl.u32 %v637, 7
        %v639 = vsub.s32 2, %v638
        %v640 = vrot.slane %v226, %v639
        %v641 = vmul.f32 %v621, %v640
        %v642 = vmul.f32 %v293, %v640
        %v643 = vmul.f32 %v360, %v640
        %v644 = vmul.f32 %v622, %v640
        %v645 = vmul.f32 %v295, %v640
        %v646 = vmul.f32 %v361, %v640
        %v647 = vmul.f32 %v623, %v640
        %v648 = vmul.f32 %v297, %v640
        %v649 = vmul.f32 %v362, %v640
        %v650 = vmul.f32 %v624, %v640
        %v651 = vmul.f32 %v299, %v640
        %v652 = vmul.f32 %v363, %v640
        %v653 = vmul.f32 %v625, %v640
        %v654 = vmul.f32 %v301, %v640
        %v655 = vmul.f32 %v364, %v640
        %v656 = vmul.f32 %v626, %v640
        %v657 = vmul.f32 %v303, %v640
        %v658 = vmul.f32 %v365, %v640
        %v659 = vmul.f32 %v627, %v640
        %v660 = vmul.f32 %v305, %v640
        %v661 = vmul.f32 %v366, %v640
        %v662 = vmul.f32 %v628, %v640
        %v663 = vmul.f32 %v307, %v640
        %v664 = vmul.f32 %v367, %v640
        %v665 = vmul.f32 %v629, %v640
        %v666 = vmul.f32 %v309, %v640
        %v667 = vmul.f32 %v368, %v640
        %v668 = vmul.f32 %v630, %v640
        %v669 = vmul.f32 %v311, %v640
        %v670 = vmul.f32 %v369, %v640
        %v671 = vmul.f32 %v631, %v640
        %v672 = vmul.f32 %v313, %v640
        %v673 = vmul.f32 %v370, %v640
        %v674 = vmul.f32 %v632, %v640
        %v675 = vmul.f32 %v315, %v640
        %v676 = vmul.f32 %v371, %v640
        %v677 = vmul.f32 %v633, %v640
        %v678 = vmul.f32 %v317, %v640
        %v679 = vmul.f32 %v372, %v640
        %v680 = vmul.f32 %v634, %v640
        %v681 = vmul.f32 %v319, %v640
        %v682 = vmul.f32 %v373, %v640
        %v683 = vmul.f32 %v635, %v640
        %v684 = vmul.f32 %v321, %v640
        %v685 = vmul.f32 %v374, %v640
        %v686 = vmul.f32 %v636, %v640
        %v687 = vmul.f32 %v323, %v640
        %v688 = vmul.f32 %v375, %v640
        %vm737 = vcmask 1045504
        %v738 = vrot.slane %v641, 2
        %v739 = vrot.slane %v642, 2
        %v740 = vsel %vm737, %v738, %v739
        %v741 = vrot.slane %v643, 2
        %v742 = vsel %vm737, %v739, %v741
        %v743 = vrot.slane %v644, 2
        %v744 = vrot.slane %v645, 2
        %v745 = vsel %vm737, %v743, %v744
        %v746 = vrot.slane %v646, 2
        %v747 = vsel %vm737, %v744, %v746
        %v748 = vrot.slane %v647, 2
        %v749 = vrot.slane %v648, 2
        %v750 = vsel %vm737, %v748, %v749
        %v751 = vrot.slane %v649, 2
        %v752 = vsel %vm737, %v749, %v751
        %v753 = vrot.slane %v650, 2
        %v754 = vrot.slane %v651, 2
        %v755 = vsel %vm737, %v753, %v754
        %v756 = vrot.slane %v652, 2
        %v757 = vsel %vm737, %v754, %v756
        %v758 = vrot.slane %v653, 2
        %v759 = vrot.slane %v654, 2
        %v760 = vsel %vm737, %v758, %v759
        %v761 = vrot.slane %v655, 2
        %v762 = vsel %vm737, %v759, %v761
        %v763 = vrot.slane %v656, 2
        %v764 = vrot.slane %v657, 2
        %v765 = vsel %vm737, %v763, %v764
        %v766 = vrot.slane %v658, 2
        %v767 = vsel %vm737, %v764, %v766
        %v768 = vrot.slane %v659, 2
        %v769 = vrot.slane %v660, 2
        %v770 = vsel %vm737, %v768, %v769
        %v771 = vrot.slane %v661, 2
        %v772 = vsel %vm737, %v769, %v771
        %v773 = vrot.slane %v662, 2
        %v774 = vrot.slane %v663, 2
        %v775 = vsel %vm737, %v773, %v774
        %v776 = vrot.slane %v664, 2
        %v777 = vsel %vm737, %v774, %v776
        %v778 = vrot.slane %v665, 2
        %v779 = vrot.slane %v666, 2
        %v780 = vsel %vm737, %v778, %v779
        %v781 = vrot.slane %v667, 2
        %v782 = vsel %vm737, %v779, %v781
        %v783 = vrot.slane %v668, 2
        %v784 = vrot.slane %v669, 2
        %v785 = vsel %vm737, %v783, %v784
        %v786 = vrot.slane %v670, 2
        %v787 = vsel %vm737, %v784, %v786
        %v788 = vrot.slane %v671, 2
        %v789 = vrot.slane %v672, 2
        %v790 = vsel %vm737, %v788, %v789
        %v791 = vrot.slane %v673, 2
        %v792 = vsel %vm737, %v789, %v791
        %v793 = vrot.slane %v674, 2
        %v794 = vrot.slane %v675, 2
        %v795 = vsel %vm737, %v793, %v794
        %v796 = vrot.slane %v676, 2
        %v797 = vsel %vm737, %v794, %v796
        %v798 = vrot.slane %v677, 2
        %v799 = vrot.slane %v678, 2
        %v800 = vsel %vm737, %v798, %v799
        %v801 = vrot.slane %v679, 2
        %v802 = vsel %vm737, %v799, %v801
        %v803 = vrot.slane %v680, 2
        %v804 = vrot.slane %v681, 2
        %v805 = vsel %vm737, %v803, %v804
        %v806 = vrot.slane %v682, 2
        %v807 = vsel %vm737, %v804, %v806
        %v808 = vrot.slane %v683, 2
        %v809 = vrot.slane %v684, 2
        %v810 = vsel %vm737, %v808, %v809
        %v811 = vrot.slane %v685, 2
        %v812 = vsel %vm737, %v809, %v811
        %v813 = vrot.slane %v686, 2
        %v814 = vrot.slane %v687, 2
        %v815 = vsel %vm737, %v813, %v814
        %v816 = vrot.slane %v688, 2
        %v817 = vsel %vm737, %v814, %v816
        %v850 = vadd.f32 %v589, %v740
        %v851 = vadd.f32 %v590, %v742
        %v852 = vadd.f32 %v591, %v745
        %v853 = vadd.f32 %v592, %v747
        %v854 = vadd.f32 %v593, %v750
        %v855 = vadd.f32 %v594, %v752
        %v856 = vadd.f32 %v595, %v755
        %v857 = vadd.f32 %v596, %v757
        %v858 = vadd.f32 %v597, %v760
        %v859 = vadd.f32 %v598, %v762
        %v860 = vadd.f32 %v599, %v765
        %v861 = vadd.f32 %v600, %v767
        %v862 = vadd.f32 %v601, %v770
        %v863 = vadd.f32 %v602, %v772
        %v864 = vadd.f32 %v603, %v775
        %v865 = vadd.f32 %v604, %v777
        %v866 = vadd.f32 %v605, %v780
        %v867 = vadd.f32 %v606, %v782
        %v868 = vadd.f32 %v607, %v785
        %v869 = vadd.f32 %v608, %v787
        %v870 = vadd.f32 %v609, %v790
        %v871 = vadd.f32 %v610, %v792
        %v872 = vadd.f32 %v611, %v795
        %v873 = vadd.f32 %v612, %v797
        %v874 = vadd.f32 %v613, %v800
        %v875 = vadd.f32 %v614, %v802
        %v876 = vadd.f32 %v615, %v805
        %v877 = vadd.f32 %v616, %v807
        %v878 = vadd.f32 %v617, %v810
        %v879 = vadd.f32 %v618, %v812
        %v880 = vadd.f32 %v619, %v815
        %v881 = vadd.f32 %v620, %v817
        %s882 = scalar_lea.vmem %s222, 12
        %v883 = vld [vmem:[%s882] sm:$0xf]
        %v884 = vld [vmem:[%s882 + $0x4] sm:$0xf]
        %v885 = vld [vmem:[%s882 + $0xc] sm:$0xf]
        %v886 = vld [vmem:[%s882 + $0x10] sm:$0xf]
        %v887 = vld [vmem:[%s882 + $0x18] sm:$0xf]
        %v888 = vld [vmem:[%s882 + $0x1c] sm:$0xf]
        %v889 = vld [vmem:[%s882 + $0x24] sm:$0xf]
        %v890 = vld [vmem:[%s882 + $0x28] sm:$0xf]
        %v891 = vld [vmem:[%s882 + $0x30] sm:$0xf]
        %v892 = vld [vmem:[%s882 + $0x34] sm:$0xf]
        %v893 = vld [vmem:[%s882 + $0x3c] sm:$0xf]
        %v894 = vld [vmem:[%s882 + $0x40] sm:$0xf]
        %v895 = vld [vmem:[%s882 + $0x48] sm:$0xf]
        %v896 = vld [vmem:[%s882 + $0x4c] sm:$0xf]
        %v897 = vld [vmem:[%s882 + $0x54] sm:$0xf]
        %v898 = vld [vmem:[%s882 + $0x58] sm:$0xf]
        %v899 = vld [vmem:[%s882 + $0x60] sm:$0xf]
        %v900 = vld [vmem:[%s882 + $0x64] sm:$0xf]
        %v901 = vld [vmem:[%s882 + $0x6c] sm:$0xf]
        %v902 = vld [vmem:[%s882 + $0x70] sm:$0xf]
        %v903 = vld [vmem:[%s882 + $0x78] sm:$0xf]
        %v904 = vld [vmem:[%s882 + $0x7c] sm:$0xf]
        %v905 = vld [vmem:[%s882 + $0x84] sm:$0xf]
        %v906 = vld [vmem:[%s882 + $0x88] sm:$0xf]
        %v907 = vld [vmem:[%s882 + $0x90] sm:$0xf]
        %v908 = vld [vmem:[%s882 + $0x94] sm:$0xf]
        %v909 = vld [vmem:[%s882 + $0x9c] sm:$0xf]
        %v910 = vld [vmem:[%s882 + $0xa0] sm:$0xf]
        %v911 = vld [vmem:[%s882 + $0xa8] sm:$0xf]
        %v912 = vld [vmem:[%s882 + $0xac] sm:$0xf]
        %v913 = vld [vmem:[%s882 + $0xb4] sm:$0xf]
        %v914 = vld [vmem:[%s882 + $0xb8] sm:$0xf]
        %v915 = vld [vmem:[%s882 + $0x8] sm:$0x1]
        %v916 = vld [vmem:[%s882 + $0x14] sm:$0x1]
        %v917 = vld [vmem:[%s882 + $0x20] sm:$0x1]
        %v918 = vld [vmem:[%s882 + $0x2c] sm:$0x1]
        %v919 = vld [vmem:[%s882 + $0x38] sm:$0x1]
        %v920 = vld [vmem:[%s882 + $0x44] sm:$0x1]
        %v921 = vld [vmem:[%s882 + $0x50] sm:$0x1]
        %v922 = vld [vmem:[%s882 + $0x5c] sm:$0x1]
        %v923 = vld [vmem:[%s882 + $0x68] sm:$0x1]
        %v924 = vld [vmem:[%s882 + $0x74] sm:$0x1]
        %v925 = vld [vmem:[%s882 + $0x80] sm:$0x1]
        %v926 = vld [vmem:[%s882 + $0x8c] sm:$0x1]
        %v927 = vld [vmem:[%s882 + $0x98] sm:$0x1]
        %v928 = vld [vmem:[%s882 + $0xa4] sm:$0x1]
        %v929 = vld [vmem:[%s882 + $0xb0] sm:$0x1]
        %v930 = vld [vmem:[%s882 + $0xbc] sm:$0x1]
        %v931 = vld [vmem:[%s882] sm:$0xe]
        %v932 = vld [vmem:[%s882 + $0xc] sm:$0xe]
        %v933 = vld [vmem:[%s882 + $0x18] sm:$0xe]
        %v934 = vld [vmem:[%s882 + $0x24] sm:$0xe]
        %v935 = vld [vmem:[%s882 + $0x30] sm:$0xe]
        %v936 = vld [vmem:[%s882 + $0x3c] sm:$0xe]
        %v937 = vld [vmem:[%s882 + $0x48] sm:$0xe]
        %v938 = vld [vmem:[%s882 + $0x54] sm:$0xe]
        %v939 = vld [vmem:[%s882 + $0x60] sm:$0xe]
        %v940 = vld [vmem:[%s882 + $0x6c] sm:$0xe]
        %v941 = vld [vmem:[%s882 + $0x78] sm:$0xe]
        %v942 = vld [vmem:[%s882 + $0x84] sm:$0xe]
        %v943 = vld [vmem:[%s882 + $0x90] sm:$0xe]
        %v944 = vld [vmem:[%s882 + $0x9c] sm:$0xe]
        %v945 = vld [vmem:[%s882 + $0xa8] sm:$0xe]
        %v946 = vld [vmem:[%s882 + $0xb4] sm:$0xe]
        %v947 = vunpack.c.l.bf16 %v883
        %v948 = vunpack.c.l.bf16 %v884
        %v949 = vunpack.c.l.bf16 %v885
        %v950 = vunpack.c.l.bf16 %v886
        %v951 = vunpack.c.l.bf16 %v887
        %v952 = vunpack.c.l.bf16 %v888
        %v953 = vunpack.c.l.bf16 %v889
        %v954 = vunpack.c.l.bf16 %v890
        %v955 = vunpack.c.l.bf16 %v891
        %v956 = vunpack.c.l.bf16 %v892
        %v957 = vunpack.c.l.bf16 %v893
        %v958 = vunpack.c.l.bf16 %v894
        %v959 = vunpack.c.l.bf16 %v895
        %v960 = vunpack.c.l.bf16 %v896
        %v961 = vunpack.c.l.bf16 %v897
        %v962 = vunpack.c.l.bf16 %v898
        %v963 = vunpack.c.l.bf16 %v899
        %v964 = vunpack.c.l.bf16 %v900
        %v965 = vunpack.c.l.bf16 %v901
        %v966 = vunpack.c.l.bf16 %v902
        %v967 = vunpack.c.l.bf16 %v903
        %v968 = vunpack.c.l.bf16 %v904
        %v969 = vunpack.c.l.bf16 %v905
        %v970 = vunpack.c.l.bf16 %v906
        %v971 = vunpack.c.l.bf16 %v907
        %v972 = vunpack.c.l.bf16 %v908
        %v973 = vunpack.c.l.bf16 %v909
        %v974 = vunpack.c.l.bf16 %v910
        %v975 = vunpack.c.l.bf16 %v911
        %v976 = vunpack.c.l.bf16 %v912
        %v977 = vunpack.c.l.bf16 %v913
        %v978 = vunpack.c.l.bf16 %v914
        %v979 = vlaneseq
        %v980 = vshrl.u32 %v979, 7
        %v981 = vsub.s32 3, %v980
        %v982 = vrot.slane %v226, %v981
        %v983 = vmul.f32 %v947, %v982
        %v984 = vmul.f32 %v948, %v982
        %v985 = vmul.f32 %v949, %v982
        %v986 = vmul.f32 %v950, %v982
        %v987 = vmul.f32 %v951, %v982
        %v988 = vmul.f32 %v952, %v982
        %v989 = vmul.f32 %v953, %v982
        %v990 = vmul.f32 %v954, %v982
        %v991 = vmul.f32 %v955, %v982
        %v992 = vmul.f32 %v956, %v982
        %v993 = vmul.f32 %v957, %v982
        %v994 = vmul.f32 %v958, %v982
        %v995 = vmul.f32 %v959, %v982
        %v996 = vmul.f32 %v960, %v982
        %v997 = vmul.f32 %v961, %v982
        %v998 = vmul.f32 %v962, %v982
        %v999 = vmul.f32 %v963, %v982
        %v1000 = vmul.f32 %v964, %v982
        %v1001 = vmul.f32 %v965, %v982
        %v1002 = vmul.f32 %v966, %v982
        %v1003 = vmul.f32 %v967, %v982
        %v1004 = vmul.f32 %v968, %v982
        %v1005 = vmul.f32 %v969, %v982
        %v1006 = vmul.f32 %v970, %v982
        %v1007 = vmul.f32 %v971, %v982
        %v1008 = vmul.f32 %v972, %v982
        %v1009 = vmul.f32 %v973, %v982
        %v1010 = vmul.f32 %v974, %v982
        %v1011 = vmul.f32 %v975, %v982
        %v1012 = vmul.f32 %v976, %v982
        %v1013 = vmul.f32 %v977, %v982
        %v1014 = vmul.f32 %v978, %v982
        %v1015 = vadd.f32 %v850, %v983
        %v1016 = vadd.f32 %v851, %v984
        %v1017 = vadd.f32 %v852, %v985
        %v1018 = vadd.f32 %v853, %v986
        %v1019 = vadd.f32 %v854, %v987
        %v1020 = vadd.f32 %v855, %v988
        %v1021 = vadd.f32 %v856, %v989
        %v1022 = vadd.f32 %v857, %v990
        %v1023 = vadd.f32 %v858, %v991
        %v1024 = vadd.f32 %v859, %v992
        %v1025 = vadd.f32 %v860, %v993
        %v1026 = vadd.f32 %v861, %v994
        %v1027 = vadd.f32 %v862, %v995
        %v1028 = vadd.f32 %v863, %v996
        %v1029 = vadd.f32 %v864, %v997
        %v1030 = vadd.f32 %v865, %v998
        %v1031 = vadd.f32 %v866, %v999
        %v1032 = vadd.f32 %v867, %v1000
        %v1033 = vadd.f32 %v868, %v1001
        %v1034 = vadd.f32 %v869, %v1002
        %v1035 = vadd.f32 %v870, %v1003
        %v1036 = vadd.f32 %v871, %v1004
        %v1037 = vadd.f32 %v872, %v1005
        %v1038 = vadd.f32 %v873, %v1006
        %v1039 = vadd.f32 %v874, %v1007
        %v1040 = vadd.f32 %v875, %v1008
        %v1041 = vadd.f32 %v876, %v1009
        %v1042 = vadd.f32 %v877, %v1010
        %v1043 = vadd.f32 %v878, %v1011
        %v1044 = vadd.f32 %v879, %v1012
        %v1045 = vadd.f32 %v880, %v1013
        %v1046 = vadd.f32 %v881, %v1014
        %v1047 = vunpack.c.l.bf16 %v915
        %v1048 = vunpack.c.l.bf16 %v916
        %v1049 = vunpack.c.l.bf16 %v917
        %v1050 = vunpack.c.l.bf16 %v918
        %v1051 = vunpack.c.l.bf16 %v919
        %v1052 = vunpack.c.l.bf16 %v920
        %v1053 = vunpack.c.l.bf16 %v921
        %v1054 = vunpack.c.l.bf16 %v922
        %v1055 = vunpack.c.l.bf16 %v923
        %v1056 = vunpack.c.l.bf16 %v924
        %v1057 = vunpack.c.l.bf16 %v925
        %v1058 = vunpack.c.l.bf16 %v926
        %v1059 = vunpack.c.l.bf16 %v927
        %v1060 = vunpack.c.l.bf16 %v928
        %v1061 = vunpack.c.l.bf16 %v929
        %v1062 = vunpack.c.l.bf16 %v930
        %v1063 = vlaneseq
        %v1064 = vshrl.u32 %v1063, 7
        %v1065 = vsub.s32 4, %v1064
        %v1066 = vrot.slane %v226, %v1065
        %v1067 = vmul.f32 %v947, %v1066
        %v1068 = vmul.f32 %v948, %v1066
        %v1069 = vmul.f32 %v1047, %v1066
        %v1070 = vmul.f32 %v949, %v1066
        %v1071 = vmul.f32 %v950, %v1066
        %v1072 = vmul.f32 %v1048, %v1066
        %v1073 = vmul.f32 %v951, %v1066
        %v1074 = vmul.f32 %v952, %v1066
        %v1075 = vmul.f32 %v1049, %v1066
        %v1076 = vmul.f32 %v953, %v1066
        %v1077 = vmul.f32 %v954, %v1066
        %v1078 = vmul.f32 %v1050, %v1066
        %v1079 = vmul.f32 %v955, %v1066
        %v1080 = vmul.f32 %v956, %v1066
        %v1081 = vmul.f32 %v1051, %v1066
        %v1082 = vmul.f32 %v957, %v1066
        %v1083 = vmul.f32 %v958, %v1066
        %v1084 = vmul.f32 %v1052, %v1066
        %v1085 = vmul.f32 %v959, %v1066
        %v1086 = vmul.f32 %v960, %v1066
        %v1087 = vmul.f32 %v1053, %v1066
        %v1088 = vmul.f32 %v961, %v1066
        %v1089 = vmul.f32 %v962, %v1066
        %v1090 = vmul.f32 %v1054, %v1066
        %v1091 = vmul.f32 %v963, %v1066
        %v1092 = vmul.f32 %v964, %v1066
        %v1093 = vmul.f32 %v1055, %v1066
        %v1094 = vmul.f32 %v965, %v1066
        %v1095 = vmul.f32 %v966, %v1066
        %v1096 = vmul.f32 %v1056, %v1066
        %v1097 = vmul.f32 %v967, %v1066
        %v1098 = vmul.f32 %v968, %v1066
        %v1099 = vmul.f32 %v1057, %v1066
        %v1100 = vmul.f32 %v969, %v1066
        %v1101 = vmul.f32 %v970, %v1066
        %v1102 = vmul.f32 %v1058, %v1066
        %v1103 = vmul.f32 %v971, %v1066
        %v1104 = vmul.f32 %v972, %v1066
        %v1105 = vmul.f32 %v1059, %v1066
        %v1106 = vmul.f32 %v973, %v1066
        %v1107 = vmul.f32 %v974, %v1066
        %v1108 = vmul.f32 %v1060, %v1066
        %v1109 = vmul.f32 %v975, %v1066
        %v1110 = vmul.f32 %v976, %v1066
        %v1111 = vmul.f32 %v1061, %v1066
        %v1112 = vmul.f32 %v977, %v1066
        %v1113 = vmul.f32 %v978, %v1066
        %v1114 = vmul.f32 %v1062, %v1066
        %v1163 = vrot.slane %v1067, 1
        %v1164 = vrot.slane %v1068, 1
        %v1165 = vsel %vm476, %v1163, %v1164
        %v1166 = vrot.slane %v1069, 1
        %v1167 = vsel %vm476, %v1164, %v1166
        %v1168 = vrot.slane %v1070, 1
        %v1169 = vrot.slane %v1071, 1
        %v1170 = vsel %vm476, %v1168, %v1169
        %v1171 = vrot.slane %v1072, 1
        %v1172 = vsel %vm476, %v1169, %v1171
        %v1173 = vrot.slane %v1073, 1
        %v1174 = vrot.slane %v1074, 1
        %v1175 = vsel %vm476, %v1173, %v1174
        %v1176 = vrot.slane %v1075, 1
        %v1177 = vsel %vm476, %v1174, %v1176
        %v1178 = vrot.slane %v1076, 1
        %v1179 = vrot.slane %v1077, 1
        %v1180 = vsel %vm476, %v1178, %v1179
        %v1181 = vrot.slane %v1078, 1
        %v1182 = vsel %vm476, %v1179, %v1181
        %v1183 = vrot.slane %v1079, 1
        %v1184 = vrot.slane %v1080, 1
        %v1185 = vsel %vm476, %v1183, %v1184
        %v1186 = vrot.slane %v1081, 1
        %v1187 = vsel %vm476, %v1184, %v1186
        %v1188 = vrot.slane %v1082, 1
        %v1189 = vrot.slane %v1083, 1
        %v1190 = vsel %vm476, %v1188, %v1189
        %v1191 = vrot.slane %v1084, 1
        %v1192 = vsel %vm476, %v1189, %v1191
        %v1193 = vrot.slane %v1085, 1
        %v1194 = vrot.slane %v1086, 1
        %v1195 = vsel %vm476, %v1193, %v1194
        %v1196 = vrot.slane %v1087, 1
        %v1197 = vsel %vm476, %v1194, %v1196
        %v1198 = vrot.slane %v1088, 1
        %v1199 = vrot.slane %v1089, 1
        %v1200 = vsel %vm476, %v1198, %v1199
        %v1201 = vrot.slane %v1090, 1
        %v1202 = vsel %vm476, %v1199, %v1201
        %v1203 = vrot.slane %v1091, 1
        %v1204 = vrot.slane %v1092, 1
        %v1205 = vsel %vm476, %v1203, %v1204
        %v1206 = vrot.slane %v1093, 1
        %v1207 = vsel %vm476, %v1204, %v1206
        %v1208 = vrot.slane %v1094, 1
        %v1209 = vrot.slane %v1095, 1
        %v1210 = vsel %vm476, %v1208, %v1209
        %v1211 = vrot.slane %v1096, 1
        %v1212 = vsel %vm476, %v1209, %v1211
        %v1213 = vrot.slane %v1097, 1
        %v1214 = vrot.slane %v1098, 1
        %v1215 = vsel %vm476, %v1213, %v1214
        %v1216 = vrot.slane %v1099, 1
        %v1217 = vsel %vm476, %v1214, %v1216
        %v1218 = vrot.slane %v1100, 1
        %v1219 = vrot.slane %v1101, 1
        %v1220 = vsel %vm476, %v1218, %v1219
        %v1221 = vrot.slane %v1102, 1
        %v1222 = vsel %vm476, %v1219, %v1221
        %v1223 = vrot.slane %v1103, 1
        %v1224 = vrot.slane %v1104, 1
        %v1225 = vsel %vm476, %v1223, %v1224
        %v1226 = vrot.slane %v1105, 1
        %v1227 = vsel %vm476, %v1224, %v1226
        %v1228 = vrot.slane %v1106, 1
        %v1229 = vrot.slane %v1107, 1
        %v1230 = vsel %vm476, %v1228, %v1229
        %v1231 = vrot.slane %v1108, 1
        %v1232 = vsel %vm476, %v1229, %v1231
        %v1233 = vrot.slane %v1109, 1
        %v1234 = vrot.slane %v1110, 1
        %v1235 = vsel %vm476, %v1233, %v1234
        %v1236 = vrot.slane %v1111, 1
        %v1237 = vsel %vm476, %v1234, %v1236
        %v1238 = vrot.slane %v1112, 1
        %v1239 = vrot.slane %v1113, 1
        %v1240 = vsel %vm476, %v1238, %v1239
        %v1241 = vrot.slane %v1114, 1
        %v1242 = vsel %vm476, %v1239, %v1241
        %v1275 = vadd.f32 %v1015, %v1165
        %v1276 = vadd.f32 %v1016, %v1167
        %v1277 = vadd.f32 %v1017, %v1170
        %v1278 = vadd.f32 %v1018, %v1172
        %v1279 = vadd.f32 %v1019, %v1175
        %v1280 = vadd.f32 %v1020, %v1177
        %v1281 = vadd.f32 %v1021, %v1180
        %v1282 = vadd.f32 %v1022, %v1182
        %v1283 = vadd.f32 %v1023, %v1185
        %v1284 = vadd.f32 %v1024, %v1187
        %v1285 = vadd.f32 %v1025, %v1190
        %v1286 = vadd.f32 %v1026, %v1192
        %v1287 = vadd.f32 %v1027, %v1195
        %v1288 = vadd.f32 %v1028, %v1197
        %v1289 = vadd.f32 %v1029, %v1200
        %v1290 = vadd.f32 %v1030, %v1202
        %v1291 = vadd.f32 %v1031, %v1205
        %v1292 = vadd.f32 %v1032, %v1207
        %v1293 = vadd.f32 %v1033, %v1210
        %v1294 = vadd.f32 %v1034, %v1212
        %v1295 = vadd.f32 %v1035, %v1215
        %v1296 = vadd.f32 %v1036, %v1217
        %v1297 = vadd.f32 %v1037, %v1220
        %v1298 = vadd.f32 %v1038, %v1222
        %v1299 = vadd.f32 %v1039, %v1225
        %v1300 = vadd.f32 %v1040, %v1227
        %v1301 = vadd.f32 %v1041, %v1230
        %v1302 = vadd.f32 %v1042, %v1232
        %v1303 = vadd.f32 %v1043, %v1235
        %v1304 = vadd.f32 %v1044, %v1237
        %v1305 = vadd.f32 %v1045, %v1240
        %v1306 = vadd.f32 %v1046, %v1242
        %v1307 = vunpack.c.l.bf16 %v931
        %v1308 = vunpack.c.l.bf16 %v932
        %v1309 = vunpack.c.l.bf16 %v933
        %v1310 = vunpack.c.l.bf16 %v934
        %v1311 = vunpack.c.l.bf16 %v935
        %v1312 = vunpack.c.l.bf16 %v936
        %v1313 = vunpack.c.l.bf16 %v937
        %v1314 = vunpack.c.l.bf16 %v938
        %v1315 = vunpack.c.l.bf16 %v939
        %v1316 = vunpack.c.l.bf16 %v940
        %v1317 = vunpack.c.l.bf16 %v941
        %v1318 = vunpack.c.l.bf16 %v942
        %v1319 = vunpack.c.l.bf16 %v943
        %v1320 = vunpack.c.l.bf16 %v944
        %v1321 = vunpack.c.l.bf16 %v945
        %v1322 = vunpack.c.l.bf16 %v946
        %v1323 = vlaneseq
        %v1324 = vshrl.u32 %v1323, 7
        %v1325 = vsub.s32 5, %v1324
        %v1326 = vrot.slane %v226, %v1325
        %v1327 = vmul.f32 %v1307, %v1326
        %v1328 = vmul.f32 %v948, %v1326
        %v1329 = vmul.f32 %v1047, %v1326
        %v1330 = vmul.f32 %v1308, %v1326
        %v1331 = vmul.f32 %v950, %v1326
        %v1332 = vmul.f32 %v1048, %v1326
        %v1333 = vmul.f32 %v1309, %v1326
        %v1334 = vmul.f32 %v952, %v1326
        %v1335 = vmul.f32 %v1049, %v1326
        %v1336 = vmul.f32 %v1310, %v1326
        %v1337 = vmul.f32 %v954, %v1326
        %v1338 = vmul.f32 %v1050, %v1326
        %v1339 = vmul.f32 %v1311, %v1326
        %v1340 = vmul.f32 %v956, %v1326
        %v1341 = vmul.f32 %v1051, %v1326
        %v1342 = vmul.f32 %v1312, %v1326
        %v1343 = vmul.f32 %v958, %v1326
        %v1344 = vmul.f32 %v1052, %v1326
        %v1345 = vmul.f32 %v1313, %v1326
        %v1346 = vmul.f32 %v960, %v1326
        %v1347 = vmul.f32 %v1053, %v1326
        %v1348 = vmul.f32 %v1314, %v1326
        %v1349 = vmul.f32 %v962, %v1326
        %v1350 = vmul.f32 %v1054, %v1326
        %v1351 = vmul.f32 %v1315, %v1326
        %v1352 = vmul.f32 %v964, %v1326
        %v1353 = vmul.f32 %v1055, %v1326
        %v1354 = vmul.f32 %v1316, %v1326
        %v1355 = vmul.f32 %v966, %v1326
        %v1356 = vmul.f32 %v1056, %v1326
        %v1357 = vmul.f32 %v1317, %v1326
        %v1358 = vmul.f32 %v968, %v1326
        %v1359 = vmul.f32 %v1057, %v1326
        %v1360 = vmul.f32 %v1318, %v1326
        %v1361 = vmul.f32 %v970, %v1326
        %v1362 = vmul.f32 %v1058, %v1326
        %v1363 = vmul.f32 %v1319, %v1326
        %v1364 = vmul.f32 %v972, %v1326
        %v1365 = vmul.f32 %v1059, %v1326
        %v1366 = vmul.f32 %v1320, %v1326
        %v1367 = vmul.f32 %v974, %v1326
        %v1368 = vmul.f32 %v1060, %v1326
        %v1369 = vmul.f32 %v1321, %v1326
        %v1370 = vmul.f32 %v976, %v1326
        %v1371 = vmul.f32 %v1061, %v1326
        %v1372 = vmul.f32 %v1322, %v1326
        %v1373 = vmul.f32 %v978, %v1326
        %v1374 = vmul.f32 %v1062, %v1326
        %v1423 = vrot.slane %v1327, 2
        %v1424 = vrot.slane %v1328, 2
        %v1425 = vsel %vm737, %v1423, %v1424
        %v1426 = vrot.slane %v1329, 2
        %v1427 = vsel %vm737, %v1424, %v1426
        %v1428 = vrot.slane %v1330, 2
        %v1429 = vrot.slane %v1331, 2
        %v1430 = vsel %vm737, %v1428, %v1429
        %v1431 = vrot.slane %v1332, 2
        %v1432 = vsel %vm737, %v1429, %v1431
        %v1433 = vrot.slane %v1333, 2
        %v1434 = vrot.slane %v1334, 2
        %v1435 = vsel %vm737, %v1433, %v1434
        %v1436 = vrot.slane %v1335, 2
        %v1437 = vsel %vm737, %v1434, %v1436
        %v1438 = vrot.slane %v1336, 2
        %v1439 = vrot.slane %v1337, 2
        %v1440 = vsel %vm737, %v1438, %v1439
        %v1441 = vrot.slane %v1338, 2
        %v1442 = vsel %vm737, %v1439, %v1441
        %v1443 = vrot.slane %v1339, 2
        %v1444 = vrot.slane %v1340, 2
        %v1445 = vsel %vm737, %v1443, %v1444
        %v1446 = vrot.slane %v1341, 2
        %v1447 = vsel %vm737, %v1444, %v1446
        %v1448 = vrot.slane %v1342, 2
        %v1449 = vrot.slane %v1343, 2
        %v1450 = vsel %vm737, %v1448, %v1449
        %v1451 = vrot.slane %v1344, 2
        %v1452 = vsel %vm737, %v1449, %v1451
        %v1453 = vrot.slane %v1345, 2
        %v1454 = vrot.slane %v1346, 2
        %v1455 = vsel %vm737, %v1453, %v1454
        %v1456 = vrot.slane %v1347, 2
        %v1457 = vsel %vm737, %v1454, %v1456
        %v1458 = vrot.slane %v1348, 2
        %v1459 = vrot.slane %v1349, 2
        %v1460 = vsel %vm737, %v1458, %v1459
        %v1461 = vrot.slane %v1350, 2
        %v1462 = vsel %vm737, %v1459, %v1461
        %v1463 = vrot.slane %v1351, 2
        %v1464 = vrot.slane %v1352, 2
        %v1465 = vsel %vm737, %v1463, %v1464
        %v1466 = vrot.slane %v1353, 2
        %v1467 = vsel %vm737, %v1464, %v1466
        %v1468 = vrot.slane %v1354, 2
        %v1469 = vrot.slane %v1355, 2
        %v1470 = vsel %vm737, %v1468, %v1469
        %v1471 = vrot.slane %v1356, 2
        %v1472 = vsel %vm737, %v1469, %v1471
        %v1473 = vrot.slane %v1357, 2
        %v1474 = vrot.slane %v1358, 2
        %v1475 = vsel %vm737, %v1473, %v1474
        %v1476 = vrot.slane %v1359, 2
        %v1477 = vsel %vm737, %v1474, %v1476
        %v1478 = vrot.slane %v1360, 2
        %v1479 = vrot.slane %v1361, 2
        %v1480 = vsel %vm737, %v1478, %v1479
        %v1481 = vrot.slane %v1362, 2
        %v1482 = vsel %vm737, %v1479, %v1481
        %v1483 = vrot.slane %v1363, 2
        %v1484 = vrot.slane %v1364, 2
        %v1485 = vsel %vm737, %v1483, %v1484
        %v1486 = vrot.slane %v1365, 2
        %v1487 = vsel %vm737, %v1484, %v1486
        %v1488 = vrot.slane %v1366, 2
        %v1489 = vrot.slane %v1367, 2
        %v1490 = vsel %vm737, %v1488, %v1489
        %v1491 = vrot.slane %v1368, 2
        %v1492 = vsel %vm737, %v1489, %v1491
        %v1493 = vrot.slane %v1369, 2
        %v1494 = vrot.slane %v1370, 2
        %v1495 = vsel %vm737, %v1493, %v1494
        %v1496 = vrot.slane %v1371, 2
        %v1497 = vsel %vm737, %v1494, %v1496
        %v1498 = vrot.slane %v1372, 2
        %v1499 = vrot.slane %v1373, 2
        %v1500 = vsel %vm737, %v1498, %v1499
        %v1501 = vrot.slane %v1374, 2
        %v1502 = vsel %vm737, %v1499, %v1501
        %v1535 = vadd.f32 %v1275, %v1425
        %v1536 = vadd.f32 %v1276, %v1427
        %v1537 = vadd.f32 %v1277, %v1430
        %v1538 = vadd.f32 %v1278, %v1432
        %v1539 = vadd.f32 %v1279, %v1435
        %v1540 = vadd.f32 %v1280, %v1437
        %v1541 = vadd.f32 %v1281, %v1440
        %v1542 = vadd.f32 %v1282, %v1442
        %v1543 = vadd.f32 %v1283, %v1445
        %v1544 = vadd.f32 %v1284, %v1447
        %v1545 = vadd.f32 %v1285, %v1450
        %v1546 = vadd.f32 %v1286, %v1452
        %v1547 = vadd.f32 %v1287, %v1455
        %v1548 = vadd.f32 %v1288, %v1457
        %v1549 = vadd.f32 %v1289, %v1460
        %v1550 = vadd.f32 %v1290, %v1462
        %v1551 = vadd.f32 %v1291, %v1465
        %v1552 = vadd.f32 %v1292, %v1467
        %v1553 = vadd.f32 %v1293, %v1470
        %v1554 = vadd.f32 %v1294, %v1472
        %v1555 = vadd.f32 %v1295, %v1475
        %v1556 = vadd.f32 %v1296, %v1477
        %v1557 = vadd.f32 %v1297, %v1480
        %v1558 = vadd.f32 %v1298, %v1482
        %v1559 = vadd.f32 %v1299, %v1485
        %v1560 = vadd.f32 %v1300, %v1487
        %v1561 = vadd.f32 %v1301, %v1490
        %v1562 = vadd.f32 %v1302, %v1492
        %v1563 = vadd.f32 %v1303, %v1495
        %v1564 = vadd.f32 %v1304, %v1497
        %v1565 = vadd.f32 %v1305, %v1500
        %v1566 = vadd.f32 %v1306, %v1502
        %s1567 = scalar_lea.vmem %s222, 24
        %v1568 = vld [vmem:[%s1567] sm:$0xf]
        %v1569 = vld [vmem:[%s1567 + $0x4] sm:$0xf]
        %v1570 = vld [vmem:[%s1567 + $0xc] sm:$0xf]
        %v1571 = vld [vmem:[%s1567 + $0x10] sm:$0xf]
        %v1572 = vld [vmem:[%s1567 + $0x18] sm:$0xf]
        %v1573 = vld [vmem:[%s1567 + $0x1c] sm:$0xf]
        %v1574 = vld [vmem:[%s1567 + $0x24] sm:$0xf]
        %v1575 = vld [vmem:[%s1567 + $0x28] sm:$0xf]
        %v1576 = vld [vmem:[%s1567 + $0x30] sm:$0xf]
        %v1577 = vld [vmem:[%s1567 + $0x34] sm:$0xf]
        %v1578 = vld [vmem:[%s1567 + $0x3c] sm:$0xf]
        %v1579 = vld [vmem:[%s1567 + $0x40] sm:$0xf]
        %v1580 = vld [vmem:[%s1567 + $0x48] sm:$0xf]
        %v1581 = vld [vmem:[%s1567 + $0x4c] sm:$0xf]
        %v1582 = vld [vmem:[%s1567 + $0x54] sm:$0xf]
        %v1583 = vld [vmem:[%s1567 + $0x58] sm:$0xf]
        %v1584 = vld [vmem:[%s1567 + $0x60] sm:$0xf]
        %v1585 = vld [vmem:[%s1567 + $0x64] sm:$0xf]
        %v1586 = vld [vmem:[%s1567 + $0x6c] sm:$0xf]
        %v1587 = vld [vmem:[%s1567 + $0x70] sm:$0xf]
        %v1588 = vld [vmem:[%s1567 + $0x78] sm:$0xf]
        %v1589 = vld [vmem:[%s1567 + $0x7c] sm:$0xf]
        %v1590 = vld [vmem:[%s1567 + $0x84] sm:$0xf]
        %v1591 = vld [vmem:[%s1567 + $0x88] sm:$0xf]
        %v1592 = vld [vmem:[%s1567 + $0x90] sm:$0xf]
        %v1593 = vld [vmem:[%s1567 + $0x94] sm:$0xf]
        %v1594 = vld [vmem:[%s1567 + $0x9c] sm:$0xf]
        %v1595 = vld [vmem:[%s1567 + $0xa0] sm:$0xf]
        %v1596 = vld [vmem:[%s1567 + $0xa8] sm:$0xf]
        %v1597 = vld [vmem:[%s1567 + $0xac] sm:$0xf]
        %v1598 = vld [vmem:[%s1567 + $0xb4] sm:$0xf]
        %v1599 = vld [vmem:[%s1567 + $0xb8] sm:$0xf]
        %v1600 = vld [vmem:[%s1567 + $0x8] sm:$0x1]
        %v1601 = vld [vmem:[%s1567 + $0x14] sm:$0x1]
        %v1602 = vld [vmem:[%s1567 + $0x20] sm:$0x1]
        %v1603 = vld [vmem:[%s1567 + $0x2c] sm:$0x1]
        %v1604 = vld [vmem:[%s1567 + $0x38] sm:$0x1]
        %v1605 = vld [vmem:[%s1567 + $0x44] sm:$0x1]
        %v1606 = vld [vmem:[%s1567 + $0x50] sm:$0x1]
        %v1607 = vld [vmem:[%s1567 + $0x5c] sm:$0x1]
        %v1608 = vld [vmem:[%s1567 + $0x68] sm:$0x1]
        %v1609 = vld [vmem:[%s1567 + $0x74] sm:$0x1]
        %v1610 = vld [vmem:[%s1567 + $0x80] sm:$0x1]
        %v1611 = vld [vmem:[%s1567 + $0x8c] sm:$0x1]
        %v1612 = vld [vmem:[%s1567 + $0x98] sm:$0x1]
        %v1613 = vld [vmem:[%s1567 + $0xa4] sm:$0x1]
        %v1614 = vld [vmem:[%s1567 + $0xb0] sm:$0x1]
        %v1615 = vld [vmem:[%s1567 + $0xbc] sm:$0x1]
        %v1616 = vld [vmem:[%s1567] sm:$0xe]
        %v1617 = vld [vmem:[%s1567 + $0xc] sm:$0xe]
        %v1618 = vld [vmem:[%s1567 + $0x18] sm:$0xe]
        %v1619 = vld [vmem:[%s1567 + $0x24] sm:$0xe]
        %v1620 = vld [vmem:[%s1567 + $0x30] sm:$0xe]
        %v1621 = vld [vmem:[%s1567 + $0x3c] sm:$0xe]
        %v1622 = vld [vmem:[%s1567 + $0x48] sm:$0xe]
        %v1623 = vld [vmem:[%s1567 + $0x54] sm:$0xe]
        %v1624 = vld [vmem:[%s1567 + $0x60] sm:$0xe]
        %v1625 = vld [vmem:[%s1567 + $0x6c] sm:$0xe]
        %v1626 = vld [vmem:[%s1567 + $0x78] sm:$0xe]
        %v1627 = vld [vmem:[%s1567 + $0x84] sm:$0xe]
        %v1628 = vld [vmem:[%s1567 + $0x90] sm:$0xe]
        %v1629 = vld [vmem:[%s1567 + $0x9c] sm:$0xe]
        %v1630 = vld [vmem:[%s1567 + $0xa8] sm:$0xe]
        %v1631 = vld [vmem:[%s1567 + $0xb4] sm:$0xe]
        %v1632 = vunpack.c.l.bf16 %v1568
        %v1633 = vunpack.c.l.bf16 %v1569
        %v1634 = vunpack.c.l.bf16 %v1570
        %v1635 = vunpack.c.l.bf16 %v1571
        %v1636 = vunpack.c.l.bf16 %v1572
        %v1637 = vunpack.c.l.bf16 %v1573
        %v1638 = vunpack.c.l.bf16 %v1574
        %v1639 = vunpack.c.l.bf16 %v1575
        %v1640 = vunpack.c.l.bf16 %v1576
        %v1641 = vunpack.c.l.bf16 %v1577
        %v1642 = vunpack.c.l.bf16 %v1578
        %v1643 = vunpack.c.l.bf16 %v1579
        %v1644 = vunpack.c.l.bf16 %v1580
        %v1645 = vunpack.c.l.bf16 %v1581
        %v1646 = vunpack.c.l.bf16 %v1582
        %v1647 = vunpack.c.l.bf16 %v1583
        %v1648 = vunpack.c.l.bf16 %v1584
        %v1649 = vunpack.c.l.bf16 %v1585
        %v1650 = vunpack.c.l.bf16 %v1586
        %v1651 = vunpack.c.l.bf16 %v1587
        %v1652 = vunpack.c.l.bf16 %v1588
        %v1653 = vunpack.c.l.bf16 %v1589
        %v1654 = vunpack.c.l.bf16 %v1590
        %v1655 = vunpack.c.l.bf16 %v1591
        %v1656 = vunpack.c.l.bf16 %v1592
        %v1657 = vunpack.c.l.bf16 %v1593
        %v1658 = vunpack.c.l.bf16 %v1594
        %v1659 = vunpack.c.l.bf16 %v1595
        %v1660 = vunpack.c.l.bf16 %v1596
        %v1661 = vunpack.c.l.bf16 %v1597
        %v1662 = vunpack.c.l.bf16 %v1598
        %v1663 = vunpack.c.l.bf16 %v1599
        %v1664 = vlaneseq
        %v1665 = vshrl.u32 %v1664, 7
        %v1666 = vsub.s32 6, %v1665
        %v1667 = vrot.slane %v226, %v1666
        %v1668 = vmul.f32 %v1632, %v1667
        %v1669 = vmul.f32 %v1633, %v1667
        %v1670 = vmul.f32 %v1634, %v1667
        %v1671 = vmul.f32 %v1635, %v1667
        %v1672 = vmul.f32 %v1636, %v1667
        %v1673 = vmul.f32 %v1637, %v1667
        %v1674 = vmul.f32 %v1638, %v1667
        %v1675 = vmul.f32 %v1639, %v1667
        %v1676 = vmul.f32 %v1640, %v1667
        %v1677 = vmul.f32 %v1641, %v1667
        %v1678 = vmul.f32 %v1642, %v1667
        %v1679 = vmul.f32 %v1643, %v1667
        %v1680 = vmul.f32 %v1644, %v1667
        %v1681 = vmul.f32 %v1645, %v1667
        %v1682 = vmul.f32 %v1646, %v1667
        %v1683 = vmul.f32 %v1647, %v1667
        %v1684 = vmul.f32 %v1648, %v1667
        %v1685 = vmul.f32 %v1649, %v1667
        %v1686 = vmul.f32 %v1650, %v1667
        %v1687 = vmul.f32 %v1651, %v1667
        %v1688 = vmul.f32 %v1652, %v1667
        %v1689 = vmul.f32 %v1653, %v1667
        %v1690 = vmul.f32 %v1654, %v1667
        %v1691 = vmul.f32 %v1655, %v1667
        %v1692 = vmul.f32 %v1656, %v1667
        %v1693 = vmul.f32 %v1657, %v1667
        %v1694 = vmul.f32 %v1658, %v1667
        %v1695 = vmul.f32 %v1659, %v1667
        %v1696 = vmul.f32 %v1660, %v1667
        %v1697 = vmul.f32 %v1661, %v1667
        %v1698 = vmul.f32 %v1662, %v1667
        %v1699 = vmul.f32 %v1663, %v1667
        %v1700 = vadd.f32 %v1535, %v1668
        %v1701 = vadd.f32 %v1536, %v1669
        %v1702 = vadd.f32 %v1537, %v1670
        %v1703 = vadd.f32 %v1538, %v1671
        %v1704 = vadd.f32 %v1539, %v1672
        %v1705 = vadd.f32 %v1540, %v1673
        %v1706 = vadd.f32 %v1541, %v1674
        %v1707 = vadd.f32 %v1542, %v1675
        %v1708 = vadd.f32 %v1543, %v1676
        %v1709 = vadd.f32 %v1544, %v1677
        %v1710 = vadd.f32 %v1545, %v1678
        %v1711 = vadd.f32 %v1546, %v1679
        %v1712 = vadd.f32 %v1547, %v1680
        %v1713 = vadd.f32 %v1548, %v1681
        %v1714 = vadd.f32 %v1549, %v1682
        %v1715 = vadd.f32 %v1550, %v1683
        %v1716 = vadd.f32 %v1551, %v1684
        %v1717 = vadd.f32 %v1552, %v1685
        %v1718 = vadd.f32 %v1553, %v1686
        %v1719 = vadd.f32 %v1554, %v1687
        %v1720 = vadd.f32 %v1555, %v1688
        %v1721 = vadd.f32 %v1556, %v1689
        %v1722 = vadd.f32 %v1557, %v1690
        %v1723 = vadd.f32 %v1558, %v1691
        %v1724 = vadd.f32 %v1559, %v1692
        %v1725 = vadd.f32 %v1560, %v1693
        %v1726 = vadd.f32 %v1561, %v1694
        %v1727 = vadd.f32 %v1562, %v1695
        %v1728 = vadd.f32 %v1563, %v1696
        %v1729 = vadd.f32 %v1564, %v1697
        %v1730 = vadd.f32 %v1565, %v1698
        %v1731 = vadd.f32 %v1566, %v1699
        %v1732 = vunpack.c.l.bf16 %v1600
        %v1733 = vunpack.c.l.bf16 %v1601
        %v1734 = vunpack.c.l.bf16 %v1602
        %v1735 = vunpack.c.l.bf16 %v1603
        %v1736 = vunpack.c.l.bf16 %v1604
        %v1737 = vunpack.c.l.bf16 %v1605
        %v1738 = vunpack.c.l.bf16 %v1606
        %v1739 = vunpack.c.l.bf16 %v1607
        %v1740 = vunpack.c.l.bf16 %v1608
        %v1741 = vunpack.c.l.bf16 %v1609
        %v1742 = vunpack.c.l.bf16 %v1610
        %v1743 = vunpack.c.l.bf16 %v1611
        %v1744 = vunpack.c.l.bf16 %v1612
        %v1745 = vunpack.c.l.bf16 %v1613
        %v1746 = vunpack.c.l.bf16 %v1614
        %v1747 = vunpack.c.l.bf16 %v1615
        %v1748 = vlaneseq
        %v1749 = vshrl.u32 %v1748, 7
        %v1750 = vsub.s32 7, %v1749
        %v1751 = vrot.slane %v226, %v1750
        %v1752 = vmul.f32 %v1632, %v1751
        %v1753 = vmul.f32 %v1633, %v1751
        %v1754 = vmul.f32 %v1732, %v1751
        %v1755 = vmul.f32 %v1634, %v1751
        %v1756 = vmul.f32 %v1635, %v1751
        %v1757 = vmul.f32 %v1733, %v1751
        %v1758 = vmul.f32 %v1636, %v1751
        %v1759 = vmul.f32 %v1637, %v1751
        %v1760 = vmul.f32 %v1734, %v1751
        %v1761 = vmul.f32 %v1638, %v1751
        %v1762 = vmul.f32 %v1639, %v1751
        %v1763 = vmul.f32 %v1735, %v1751
        %v1764 = vmul.f32 %v1640, %v1751
        %v1765 = vmul.f32 %v1641, %v1751
        %v1766 = vmul.f32 %v1736, %v1751
        %v1767 = vmul.f32 %v1642, %v1751
        %v1768 = vmul.f32 %v1643, %v1751
        %v1769 = vmul.f32 %v1737, %v1751
        %v1770 = vmul.f32 %v1644, %v1751
        %v1771 = vmul.f32 %v1645, %v1751
        %v1772 = vmul.f32 %v1738, %v1751
        %v1773 = vmul.f32 %v1646, %v1751
        %v1774 = vmul.f32 %v1647, %v1751
        %v1775 = vmul.f32 %v1739, %v1751
        %v1776 = vmul.f32 %v1648, %v1751
        %v1777 = vmul.f32 %v1649, %v1751
        %v1778 = vmul.f32 %v1740, %v1751
        %v1779 = vmul.f32 %v1650, %v1751
        %v1780 = vmul.f32 %v1651, %v1751
        %v1781 = vmul.f32 %v1741, %v1751
        %v1782 = vmul.f32 %v1652, %v1751
        %v1783 = vmul.f32 %v1653, %v1751
        %v1784 = vmul.f32 %v1742, %v1751
        %v1785 = vmul.f32 %v1654, %v1751
        %v1786 = vmul.f32 %v1655, %v1751
        %v1787 = vmul.f32 %v1743, %v1751
        %v1788 = vmul.f32 %v1656, %v1751
        %v1789 = vmul.f32 %v1657, %v1751
        %v1790 = vmul.f32 %v1744, %v1751
        %v1791 = vmul.f32 %v1658, %v1751
        %v1792 = vmul.f32 %v1659, %v1751
        %v1793 = vmul.f32 %v1745, %v1751
        %v1794 = vmul.f32 %v1660, %v1751
        %v1795 = vmul.f32 %v1661, %v1751
        %v1796 = vmul.f32 %v1746, %v1751
        %v1797 = vmul.f32 %v1662, %v1751
        %v1798 = vmul.f32 %v1663, %v1751
        %v1799 = vmul.f32 %v1747, %v1751
        %v1848 = vrot.slane %v1752, 1
        %v1849 = vrot.slane %v1753, 1
        %v1850 = vsel %vm476, %v1848, %v1849
        %v1851 = vrot.slane %v1754, 1
        %v1852 = vsel %vm476, %v1849, %v1851
        %v1853 = vrot.slane %v1755, 1
        %v1854 = vrot.slane %v1756, 1
        %v1855 = vsel %vm476, %v1853, %v1854
        %v1856 = vrot.slane %v1757, 1
        %v1857 = vsel %vm476, %v1854, %v1856
        %v1858 = vrot.slane %v1758, 1
        %v1859 = vrot.slane %v1759, 1
        %v1860 = vsel %vm476, %v1858, %v1859
        %v1861 = vrot.slane %v1760, 1
        %v1862 = vsel %vm476, %v1859, %v1861
        %v1863 = vrot.slane %v1761, 1
        %v1864 = vrot.slane %v1762, 1
        %v1865 = vsel %vm476, %v1863, %v1864
        %v1866 = vrot.slane %v1763, 1
        %v1867 = vsel %vm476, %v1864, %v1866
        %v1868 = vrot.slane %v1764, 1
        %v1869 = vrot.slane %v1765, 1
        %v1870 = vsel %vm476, %v1868, %v1869
        %v1871 = vrot.slane %v1766, 1
        %v1872 = vsel %vm476, %v1869, %v1871
        %v1873 = vrot.slane %v1767, 1
        %v1874 = vrot.slane %v1768, 1
        %v1875 = vsel %vm476, %v1873, %v1874
        %v1876 = vrot.slane %v1769, 1
        %v1877 = vsel %vm476, %v1874, %v1876
        %v1878 = vrot.slane %v1770, 1
        %v1879 = vrot.slane %v1771, 1
        %v1880 = vsel %vm476, %v1878, %v1879
        %v1881 = vrot.slane %v1772, 1
        %v1882 = vsel %vm476, %v1879, %v1881
        %v1883 = vrot.slane %v1773, 1
        %v1884 = vrot.slane %v1774, 1
        %v1885 = vsel %vm476, %v1883, %v1884
        %v1886 = vrot.slane %v1775, 1
        %v1887 = vsel %vm476, %v1884, %v1886
        %v1888 = vrot.slane %v1776, 1
        %v1889 = vrot.slane %v1777, 1
        %v1890 = vsel %vm476, %v1888, %v1889
        %v1891 = vrot.slane %v1778, 1
        %v1892 = vsel %vm476, %v1889, %v1891
        %v1893 = vrot.slane %v1779, 1
        %v1894 = vrot.slane %v1780, 1
        %v1895 = vsel %vm476, %v1893, %v1894
        %v1896 = vrot.slane %v1781, 1
        %v1897 = vsel %vm476, %v1894, %v1896
        %v1898 = vrot.slane %v1782, 1
        %v1899 = vrot.slane %v1783, 1
        %v1900 = vsel %vm476, %v1898, %v1899
        %v1901 = vrot.slane %v1784, 1
        %v1902 = vsel %vm476, %v1899, %v1901
        %v1903 = vrot.slane %v1785, 1
        %v1904 = vrot.slane %v1786, 1
        %v1905 = vsel %vm476, %v1903, %v1904
        %v1906 = vrot.slane %v1787, 1
        %v1907 = vsel %vm476, %v1904, %v1906
        %v1908 = vrot.slane %v1788, 1
        %v1909 = vrot.slane %v1789, 1
        %v1910 = vsel %vm476, %v1908, %v1909
        %v1911 = vrot.slane %v1790, 1
        %v1912 = vsel %vm476, %v1909, %v1911
        %v1913 = vrot.slane %v1791, 1
        %v1914 = vrot.slane %v1792, 1
        %v1915 = vsel %vm476, %v1913, %v1914
        %v1916 = vrot.slane %v1793, 1
        %v1917 = vsel %vm476, %v1914, %v1916
        %v1918 = vrot.slane %v1794, 1
        %v1919 = vrot.slane %v1795, 1
        %v1920 = vsel %vm476, %v1918, %v1919
        %v1921 = vrot.slane %v1796, 1
        %v1922 = vsel %vm476, %v1919, %v1921
        %v1923 = vrot.slane %v1797, 1
        %v1924 = vrot.slane %v1798, 1
        %v1925 = vsel %vm476, %v1923, %v1924
        %v1926 = vrot.slane %v1799, 1
        %v1927 = vsel %vm476, %v1924, %v1926
        %v1960 = vadd.f32 %v1700, %v1850
        %v1961 = vadd.f32 %v1701, %v1852
        %v1962 = vadd.f32 %v1702, %v1855
        %v1963 = vadd.f32 %v1703, %v1857
        %v1964 = vadd.f32 %v1704, %v1860
        %v1965 = vadd.f32 %v1705, %v1862
        %v1966 = vadd.f32 %v1706, %v1865
        %v1967 = vadd.f32 %v1707, %v1867
        %v1968 = vadd.f32 %v1708, %v1870
        %v1969 = vadd.f32 %v1709, %v1872
        %v1970 = vadd.f32 %v1710, %v1875
        %v1971 = vadd.f32 %v1711, %v1877
        %v1972 = vadd.f32 %v1712, %v1880
        %v1973 = vadd.f32 %v1713, %v1882
        %v1974 = vadd.f32 %v1714, %v1885
        %v1975 = vadd.f32 %v1715, %v1887
        %v1976 = vadd.f32 %v1716, %v1890
        %v1977 = vadd.f32 %v1717, %v1892
        %v1978 = vadd.f32 %v1718, %v1895
        %v1979 = vadd.f32 %v1719, %v1897
        %v1980 = vadd.f32 %v1720, %v1900
        %v1981 = vadd.f32 %v1721, %v1902
        %v1982 = vadd.f32 %v1722, %v1905
        %v1983 = vadd.f32 %v1723, %v1907
        %v1984 = vadd.f32 %v1724, %v1910
        %v1985 = vadd.f32 %v1725, %v1912
        %v1986 = vadd.f32 %v1726, %v1915
        %v1987 = vadd.f32 %v1727, %v1917
        %v1988 = vadd.f32 %v1728, %v1920
        %v1989 = vadd.f32 %v1729, %v1922
        %v1990 = vadd.f32 %v1730, %v1925
        %v1991 = vadd.f32 %v1731, %v1927
        %v1992 = vunpack.c.l.bf16 %v1616
        %v1993 = vunpack.c.l.bf16 %v1617
        %v1994 = vunpack.c.l.bf16 %v1618
        %v1995 = vunpack.c.l.bf16 %v1619
        %v1996 = vunpack.c.l.bf16 %v1620
        %v1997 = vunpack.c.l.bf16 %v1621
        %v1998 = vunpack.c.l.bf16 %v1622
        %v1999 = vunpack.c.l.bf16 %v1623
        %v2000 = vunpack.c.l.bf16 %v1624
        %v2001 = vunpack.c.l.bf16 %v1625
        %v2002 = vunpack.c.l.bf16 %v1626
        %v2003 = vunpack.c.l.bf16 %v1627
        %v2004 = vunpack.c.l.bf16 %v1628
        %v2005 = vunpack.c.l.bf16 %v1629
        %v2006 = vunpack.c.l.bf16 %v1630
        %v2007 = vunpack.c.l.bf16 %v1631
        %v2008 = vlaneseq
        %v2009 = vshrl.u32 %v2008, 7
        %v2010 = vsub.s32 0, %v2009
        %v2011 = vrot.slane %v227, %v2010
        %v2012 = vmul.f32 %v1992, %v2011
        %v2013 = vmul.f32 %v1633, %v2011
        %v2014 = vmul.f32 %v1732, %v2011
        %v2015 = vmul.f32 %v1993, %v2011
        %v2016 = vmul.f32 %v1635, %v2011
        %v2017 = vmul.f32 %v1733, %v2011
        %v2018 = vmul.f32 %v1994, %v2011
        %v2019 = vmul.f32 %v1637, %v2011
        %v2020 = vmul.f32 %v1734, %v2011
        %v2021 = vmul.f32 %v1995, %v2011
        %v2022 = vmul.f32 %v1639, %v2011
        %v2023 = vmul.f32 %v1735, %v2011
        %v2024 = vmul.f32 %v1996, %v2011
        %v2025 = vmul.f32 %v1641, %v2011
        %v2026 = vmul.f32 %v1736, %v2011
        %v2027 = vmul.f32 %v1997, %v2011
        %v2028 = vmul.f32 %v1643, %v2011
        %v2029 = vmul.f32 %v1737, %v2011
        %v2030 = vmul.f32 %v1998, %v2011
        %v2031 = vmul.f32 %v1645, %v2011
        %v2032 = vmul.f32 %v1738, %v2011
        %v2033 = vmul.f32 %v1999, %v2011
        %v2034 = vmul.f32 %v1647, %v2011
        %v2035 = vmul.f32 %v1739, %v2011
        %v2036 = vmul.f32 %v2000, %v2011
        %v2037 = vmul.f32 %v1649, %v2011
        %v2038 = vmul.f32 %v1740, %v2011
        %v2039 = vmul.f32 %v2001, %v2011
        %v2040 = vmul.f32 %v1651, %v2011
        %v2041 = vmul.f32 %v1741, %v2011
        %v2042 = vmul.f32 %v2002, %v2011
        %v2043 = vmul.f32 %v1653, %v2011
        %v2044 = vmul.f32 %v1742, %v2011
        %v2045 = vmul.f32 %v2003, %v2011
        %v2046 = vmul.f32 %v1655, %v2011
        %v2047 = vmul.f32 %v1743, %v2011
        %v2048 = vmul.f32 %v2004, %v2011
        %v2049 = vmul.f32 %v1657, %v2011
        %v2050 = vmul.f32 %v1744, %v2011
        %v2051 = vmul.f32 %v2005, %v2011
        %v2052 = vmul.f32 %v1659, %v2011
        %v2053 = vmul.f32 %v1745, %v2011
        %v2054 = vmul.f32 %v2006, %v2011
        %v2055 = vmul.f32 %v1661, %v2011
        %v2056 = vmul.f32 %v1746, %v2011
        %v2057 = vmul.f32 %v2007, %v2011
        %v2058 = vmul.f32 %v1663, %v2011
        %v2059 = vmul.f32 %v1747, %v2011
        %v2108 = vrot.slane %v2012, 2
        %v2109 = vrot.slane %v2013, 2
        %v2110 = vsel %vm737, %v2108, %v2109
        %v2111 = vrot.slane %v2014, 2
        %v2112 = vsel %vm737, %v2109, %v2111
        %v2113 = vrot.slane %v2015, 2
        %v2114 = vrot.slane %v2016, 2
        %v2115 = vsel %vm737, %v2113, %v2114
        %v2116 = vrot.slane %v2017, 2
        %v2117 = vsel %vm737, %v2114, %v2116
        %v2118 = vrot.slane %v2018, 2
        %v2119 = vrot.slane %v2019, 2
        %v2120 = vsel %vm737, %v2118, %v2119
        %v2121 = vrot.slane %v2020, 2
        %v2122 = vsel %vm737, %v2119, %v2121
        %v2123 = vrot.slane %v2021, 2
        %v2124 = vrot.slane %v2022, 2
        %v2125 = vsel %vm737, %v2123, %v2124
        %v2126 = vrot.slane %v2023, 2
        %v2127 = vsel %vm737, %v2124, %v2126
        %v2128 = vrot.slane %v2024, 2
        %v2129 = vrot.slane %v2025, 2
        %v2130 = vsel %vm737, %v2128, %v2129
        %v2131 = vrot.slane %v2026, 2
        %v2132 = vsel %vm737, %v2129, %v2131
        %v2133 = vrot.slane %v2027, 2
        %v2134 = vrot.slane %v2028, 2
        %v2135 = vsel %vm737, %v2133, %v2134
        %v2136 = vrot.slane %v2029, 2
        %v2137 = vsel %vm737, %v2134, %v2136
        %v2138 = vrot.slane %v2030, 2
        %v2139 = vrot.slane %v2031, 2
        %v2140 = vsel %vm737, %v2138, %v2139
        %v2141 = vrot.slane %v2032, 2
        %v2142 = vsel %vm737, %v2139, %v2141
        %v2143 = vrot.slane %v2033, 2
        %v2144 = vrot.slane %v2034, 2
        %v2145 = vsel %vm737, %v2143, %v2144
        %v2146 = vrot.slane %v2035, 2
        %v2147 = vsel %vm737, %v2144, %v2146
        %v2148 = vrot.slane %v2036, 2
        %v2149 = vrot.slane %v2037, 2
        %v2150 = vsel %vm737, %v2148, %v2149
        %v2151 = vrot.slane %v2038, 2
        %v2152 = vsel %vm737, %v2149, %v2151
        %v2153 = vrot.slane %v2039, 2
        %v2154 = vrot.slane %v2040, 2
        %v2155 = vsel %vm737, %v2153, %v2154
        %v2156 = vrot.slane %v2041, 2
        %v2157 = vsel %vm737, %v2154, %v2156
        %v2158 = vrot.slane %v2042, 2
        %v2159 = vrot.slane %v2043, 2
        %v2160 = vsel %vm737, %v2158, %v2159
        %v2161 = vrot.slane %v2044, 2
        %v2162 = vsel %vm737, %v2159, %v2161
        %v2163 = vrot.slane %v2045, 2
        %v2164 = vrot.slane %v2046, 2
        %v2165 = vsel %vm737, %v2163, %v2164
        %v2166 = vrot.slane %v2047, 2
        %v2167 = vsel %vm737, %v2164, %v2166
        %v2168 = vrot.slane %v2048, 2
        %v2169 = vrot.slane %v2049, 2
        %v2170 = vsel %vm737, %v2168, %v2169
        %v2171 = vrot.slane %v2050, 2
        %v2172 = vsel %vm737, %v2169, %v2171
        %v2173 = vrot.slane %v2051, 2
        %v2174 = vrot.slane %v2052, 2
        %v2175 = vsel %vm737, %v2173, %v2174
        %v2176 = vrot.slane %v2053, 2
        %v2177 = vsel %vm737, %v2174, %v2176
        %v2178 = vrot.slane %v2054, 2
        %v2179 = vrot.slane %v2055, 2
        %v2180 = vsel %vm737, %v2178, %v2179
        %v2181 = vrot.slane %v2056, 2
        %v2182 = vsel %vm737, %v2179, %v2181
        %v2183 = vrot.slane %v2057, 2
        %v2184 = vrot.slane %v2058, 2
        %v2185 = vsel %vm737, %v2183, %v2184
        %v2186 = vrot.slane %v2059, 2
        %v2187 = vsel %vm737, %v2184, %v2186
        %v2220 = vadd.f32 %v1960, %v2110
        %v2221 = vadd.f32 %v1961, %v2112
        %v2222 = vadd.f32 %v1962, %v2115
        %v2223 = vadd.f32 %v1963, %v2117
        %v2224 = vadd.f32 %v1964, %v2120
        %v2225 = vadd.f32 %v1965, %v2122
        %v2226 = vadd.f32 %v1966, %v2125
        %v2227 = vadd.f32 %v1967, %v2127
        %v2228 = vadd.f32 %v1968, %v2130
        %v2229 = vadd.f32 %v1969, %v2132
        %v2230 = vadd.f32 %v1970, %v2135
        %v2231 = vadd.f32 %v1971, %v2137
        %v2232 = vadd.f32 %v1972, %v2140
        %v2233 = vadd.f32 %v1973, %v2142
        %v2234 = vadd.f32 %v1974, %v2145
        %v2235 = vadd.f32 %v1975, %v2147
        %v2236 = vadd.f32 %v1976, %v2150
        %v2237 = vadd.f32 %v1977, %v2152
        %v2238 = vadd.f32 %v1978, %v2155
        %v2239 = vadd.f32 %v1979, %v2157
        %v2240 = vadd.f32 %v1980, %v2160
        %v2241 = vadd.f32 %v1981, %v2162
        %v2242 = vadd.f32 %v1982, %v2165
        %v2243 = vadd.f32 %v1983, %v2167
        %v2244 = vadd.f32 %v1984, %v2170
        %v2245 = vadd.f32 %v1985, %v2172
        %v2246 = vadd.f32 %v1986, %v2175
        %v2247 = vadd.f32 %v1987, %v2177
        %v2248 = vadd.f32 %v1988, %v2180
        %v2249 = vadd.f32 %v1989, %v2182
        %v2250 = vadd.f32 %v1990, %v2185
        %v2251 = vadd.f32 %v1991, %v2187
        %v2252 = vld [vmem:[%s2] sm:$0x1]
        %v2254 = vlaneseq
        %v2255 = vshrl.u32 %v2254, 7
        %v2256 = vsub.s32 0, %v2255
        %v2257 = vrot.slane %v2252, %v2256
        %v2259 = vadd.f32 %v2220, %v2257
        %v2260 = vadd.f32 %v2221, %v2257
        %v2261 = vadd.f32 %v2222, %v2257
        %v2262 = vadd.f32 %v2223, %v2257
        %v2263 = vadd.f32 %v2224, %v2257
        %v2264 = vadd.f32 %v2225, %v2257
        %v2265 = vadd.f32 %v2226, %v2257
        %v2266 = vadd.f32 %v2227, %v2257
        %v2267 = vadd.f32 %v2228, %v2257
        %v2268 = vadd.f32 %v2229, %v2257
        %v2269 = vadd.f32 %v2230, %v2257
        %v2270 = vadd.f32 %v2231, %v2257
        %v2271 = vadd.f32 %v2232, %v2257
        %v2272 = vadd.f32 %v2233, %v2257
        %v2273 = vadd.f32 %v2234, %v2257
        %v2274 = vadd.f32 %v2235, %v2257
        %v2275 = vadd.f32 %v2236, %v2257
        %v2276 = vadd.f32 %v2237, %v2257
        %v2277 = vadd.f32 %v2238, %v2257
        %v2278 = vadd.f32 %v2239, %v2257
        %v2279 = vadd.f32 %v2240, %v2257
        %v2280 = vadd.f32 %v2241, %v2257
        %v2281 = vadd.f32 %v2242, %v2257
        %v2282 = vadd.f32 %v2243, %v2257
        %v2283 = vadd.f32 %v2244, %v2257
        %v2284 = vadd.f32 %v2245, %v2257
        %v2285 = vadd.f32 %v2246, %v2257
        %v2286 = vadd.f32 %v2247, %v2257
        %v2287 = vadd.f32 %v2248, %v2257
        %v2288 = vadd.f32 %v2249, %v2257
        %v2289 = vadd.f32 %v2250, %v2257
        %v2290 = vadd.f32 %v2251, %v2257
        %v2291 = vmax.f32 %v2259, 0.0
        %v2292 = vmax.f32 %v2260, 0.0
        %v2293 = vmax.f32 %v2261, 0.0
        %v2294 = vmax.f32 %v2262, 0.0
        %v2295 = vmax.f32 %v2263, 0.0
        %v2296 = vmax.f32 %v2264, 0.0
        %v2297 = vmax.f32 %v2265, 0.0
        %v2298 = vmax.f32 %v2266, 0.0
        %v2299 = vmax.f32 %v2267, 0.0
        %v2300 = vmax.f32 %v2268, 0.0
        %v2301 = vmax.f32 %v2269, 0.0
        %v2302 = vmax.f32 %v2270, 0.0
        %v2303 = vmax.f32 %v2271, 0.0
        %v2304 = vmax.f32 %v2272, 0.0
        %v2305 = vmax.f32 %v2273, 0.0
        %v2306 = vmax.f32 %v2274, 0.0
        %v2307 = vmax.f32 %v2275, 0.0
        %v2308 = vmax.f32 %v2276, 0.0
        %v2309 = vmax.f32 %v2277, 0.0
        %v2310 = vmax.f32 %v2278, 0.0
        %v2311 = vmax.f32 %v2279, 0.0
        %v2312 = vmax.f32 %v2280, 0.0
        %v2313 = vmax.f32 %v2281, 0.0
        %v2314 = vmax.f32 %v2282, 0.0
        %v2315 = vmax.f32 %v2283, 0.0
        %v2316 = vmax.f32 %v2284, 0.0
        %v2317 = vmax.f32 %v2285, 0.0
        %v2318 = vmax.f32 %v2286, 0.0
        %v2319 = vmax.f32 %v2287, 0.0
        %v2320 = vmax.f32 %v2288, 0.0
        %v2321 = vmax.f32 %v2289, 0.0
        %v2322 = vmax.f32 %v2290, 0.0
        %v2323 = vpack.c.bf16 %v2292, %v2291
        %v2324 = vpack.c.bf16 %v2294, %v2293
        %v2325 = vpack.c.bf16 %v2296, %v2295
        %v2326 = vpack.c.bf16 %v2298, %v2297
        %v2327 = vpack.c.bf16 %v2300, %v2299
        %v2328 = vpack.c.bf16 %v2302, %v2301
        %v2329 = vpack.c.bf16 %v2304, %v2303
        %v2330 = vpack.c.bf16 %v2306, %v2305
        %v2331 = vpack.c.bf16 %v2308, %v2307
        %v2332 = vpack.c.bf16 %v2310, %v2309
        %v2333 = vpack.c.bf16 %v2312, %v2311
        %v2334 = vpack.c.bf16 %v2314, %v2313
        %v2335 = vpack.c.bf16 %v2316, %v2315
        %v2336 = vpack.c.bf16 %v2318, %v2317
        %v2337 = vpack.c.bf16 %v2320, %v2319
        %v2338 = vpack.c.bf16 %v2322, %v2321
        %v2339 = vld [vmem:[%s3] sm:$0xf]
        %v2340 = vld [vmem:[%s3 + $0x4] sm:$0xf]
        %v2341 = vld [vmem:[%s3 + $0x8] sm:$0xf]
        %v2342 = vld [vmem:[%s3 + $0xc] sm:$0xf]
        %v2343 = vld [vmem:[%s4] sm:$0x1]
        %v2345 = vlaneseq
        %v2346 = vshrl.u32 %v2345, 7
        %v2347 = vsub.s32 0, %v2346
        %v2348 = vrot.slane %v2343, %v2347
        %v2354 = vunpack.c.l.b16 %v2339
        %v2355 = vunpack.c.l.b16 %v2340
        %v2356 = vunpack.c.l.b16 %v2341
        %v2357 = vunpack.c.l.b16 %v2342
        %v2358 = vpack.c.b16 %v2355, %v2354
        %v2359 = vpack.c.b16 %v2357, %v2356
        %vm2362 = vcmask 261120
        %v2364 = vsel %vm2362, %v2323, 0
        %v2367 = vsel %vm2362, %v2324, 0
        %v2370 = vsel %vm2362, %v2325, 0
        %v2373 = vsel %vm2362, %v2326, 0
        %v2376 = vsel %vm2362, %v2327, 0
        %v2379 = vsel %vm2362, %v2328, 0
        %v2382 = vsel %vm2362, %v2329, 0
        %v2385 = vsel %vm2362, %v2330, 0
        %v2388 = vsel %vm2362, %v2331, 0
        %v2391 = vsel %vm2362, %v2332, 0
        %v2394 = vsel %vm2362, %v2333, 0
        %v2397 = vsel %vm2362, %v2334, 0
        %v2400 = vsel %vm2362, %v2335, 0
        %v2403 = vsel %vm2362, %v2336, 0
        %v2406 = vsel %vm2362, %v2337, 0
        %v2409 = vsel %vm2362, %v2338, 0
        %2411 = vmatprep.subr.bf16.mxu0 0
        %2412 = vmatpush1.bf16.msra.mxu0 0
        %2413 = vmatprep.subr.bf16.mxu0 0
        %2414 = vmatpush1.bf16.msra.mxu0 0
        %2415 = vmatprep.subr.bf16.mxu0 0
        %2416 = vmatpush1.bf16.msra.mxu0 0
        %2417 = vmatprep.subr.bf16.mxu0 0
        %2418 = vmatpush1.bf16.msra.mxu0 0
        %2419 = vmatprep.subr.bf16.mxu0 0
        %2420 = vmatpush1.bf16.msra.mxu0 0
        %2421 = vmatprep.subr.bf16.mxu0 0
        %2422 = vmatpush1.bf16.msra.mxu0 0
        %2423 = vmatprep.subr.bf16.mxu0 0
        %2424 = vmatpush1.bf16.msra.mxu0 %v2359
        %2425 = vmatprep.subr.bf16.mxu0 0
        %2426 = vmatpush1.bf16.msra.mxu0 %v2358
        %2427 = vmatprep.subr.bf16.mxu0 0
        %2428 = vmatpush2.bf16.msra.mxu0 0
        %2429 = vmatprep.subr.bf16.mxu0 0
        %2430 = vmatpush2.bf16.msra.mxu0 0
        %2431 = vmatprep.subr.bf16.mxu0 0
        %2432 = vmatpush2.bf16.msra.mxu0 0
        %2433 = vmatprep.subr.bf16.mxu0 0
        %2434 = vmatpush2.bf16.msra.mxu0 0
        %2435 = vmatprep.subr.bf16.mxu0 0
        %2436 = vmatpush2.bf16.msra.mxu0 0
        %2437 = vmatprep.subr.bf16.mxu0 0
        %2438 = vmatpush2.bf16.msra.mxu0 0
        %2439 = vmatprep.subr.bf16.mxu0 0
        %2440 = vmatpush2.bf16.msra.mxu0 0
        %2441 = vmatprep.subr.bf16.mxu0 0
        %2442 = vmatpush2.bf16.msra.mxu0 0
        %2443 = vmatprep.mubr.bf16.mxu0 0
        %2444 = vmatmul.mubr.bf16.gmra.mxu0 %v2364
        %v2445 = vpop.f32.mrf.mxu0
        %v2446 = vadd.f32 %v2348, %v2445
        %v2447 = vpop.f32.mrf.mxu0
        %v2448 = vpop.f32.mrf.mxu0
        %v2449 = vadd.f32 %v2348, %v2448
        %v2450 = vpop.f32.mrf.mxu0
        %2451 = vmatprep.mubr.bf16.mxu0 0
        %2452 = vmatmul.mubr.bf16.gmra.mxu0 %v2367
        %v2453 = vpop.f32.mrf.mxu0
        %v2454 = vadd.f32 %v2348, %v2453
        %v2455 = vpop.f32.mrf.mxu0
        %v2456 = vpop.f32.mrf.mxu0
        %v2457 = vadd.f32 %v2348, %v2456
        %v2458 = vpop.f32.mrf.mxu0
        %2459 = vmatprep.mubr.bf16.mxu0 0
        %2460 = vmatmul.mubr.bf16.gmra.mxu0 %v2370
        %v2461 = vpop.f32.mrf.mxu0
        %v2462 = vadd.f32 %v2348, %v2461
        %v2463 = vpop.f32.mrf.mxu0
        %v2464 = vpop.f32.mrf.mxu0
        %v2465 = vadd.f32 %v2348, %v2464
        %v2466 = vpop.f32.mrf.mxu0
        %2467 = vmatprep.mubr.bf16.mxu0 0
        %2468 = vmatmul.mubr.bf16.gmra.mxu0 %v2373
        %v2469 = vpop.f32.mrf.mxu0
        %v2470 = vadd.f32 %v2348, %v2469
        %v2471 = vpop.f32.mrf.mxu0
        %v2472 = vpop.f32.mrf.mxu0
        %v2473 = vadd.f32 %v2348, %v2472
        %v2474 = vpop.f32.mrf.mxu0
        %2475 = vmatprep.mubr.bf16.mxu0 0
        %2476 = vmatmul.mubr.bf16.gmra.mxu0 %v2376
        %v2477 = vpop.f32.mrf.mxu0
        %v2478 = vadd.f32 %v2348, %v2477
        %v2479 = vpop.f32.mrf.mxu0
        %v2480 = vpop.f32.mrf.mxu0
        %v2481 = vadd.f32 %v2348, %v2480
        %v2482 = vpop.f32.mrf.mxu0
        %2483 = vmatprep.mubr.bf16.mxu0 0
        %2484 = vmatmul.mubr.bf16.gmra.mxu0 %v2379
        %v2485 = vpop.f32.mrf.mxu0
        %v2486 = vadd.f32 %v2348, %v2485
        %v2487 = vpop.f32.mrf.mxu0
        %v2488 = vpop.f32.mrf.mxu0
        %v2489 = vadd.f32 %v2348, %v2488
        %v2490 = vpop.f32.mrf.mxu0
        %2491 = vmatprep.mubr.bf16.mxu0 0
        %2492 = vmatmul.mubr.bf16.gmra.mxu0 %v2382
        %v2493 = vpop.f32.mrf.mxu0
        %v2494 = vadd.f32 %v2348, %v2493
        %v2495 = vpop.f32.mrf.mxu0
        %v2496 = vpop.f32.mrf.mxu0
        %v2497 = vadd.f32 %v2348, %v2496
        %v2498 = vpop.f32.mrf.mxu0
        %2499 = vmatprep.mubr.bf16.mxu0 0
        %2500 = vmatmul.mubr.bf16.gmra.mxu0 %v2385
        %v2501 = vpop.f32.mrf.mxu0
        %v2502 = vadd.f32 %v2348, %v2501
        %v2503 = vpop.f32.mrf.mxu0
        %v2504 = vpop.f32.mrf.mxu0
        %v2505 = vadd.f32 %v2348, %v2504
        %v2506 = vpop.f32.mrf.mxu0
        %2507 = vmatprep.mubr.bf16.mxu0 0
        %2508 = vmatmul.mubr.bf16.gmra.mxu0 %v2388
        %v2509 = vpop.f32.mrf.mxu0
        %v2510 = vadd.f32 %v2348, %v2509
        %v2511 = vpop.f32.mrf.mxu0
        %v2512 = vpop.f32.mrf.mxu0
        %v2513 = vadd.f32 %v2348, %v2512
        %v2514 = vpop.f32.mrf.mxu0
        %2515 = vmatprep.mubr.bf16.mxu0 0
        %2516 = vmatmul.mubr.bf16.gmra.mxu0 %v2391
        %v2517 = vpop.f32.mrf.mxu0
        %v2518 = vadd.f32 %v2348, %v2517
        %v2519 = vpop.f32.mrf.mxu0
        %v2520 = vpop.f32.mrf.mxu0
        %v2521 = vadd.f32 %v2348, %v2520
        %v2522 = vpop.f32.mrf.mxu0
        %2523 = vmatprep.mubr.bf16.mxu0 0
        %2524 = vmatmul.mubr.bf16.gmra.mxu0 %v2394
        %v2525 = vpop.f32.mrf.mxu0
        %v2526 = vadd.f32 %v2348, %v2525
        %v2527 = vpop.f32.mrf.mxu0
        %v2528 = vpop.f32.mrf.mxu0
        %v2529 = vadd.f32 %v2348, %v2528
        %v2530 = vpop.f32.mrf.mxu0
        %2531 = vmatprep.mubr.bf16.mxu0 0
        %2532 = vmatmul.mubr.bf16.gmra.mxu0 %v2397
        %v2533 = vpop.f32.mrf.mxu0
        %v2534 = vadd.f32 %v2348, %v2533
        %v2535 = vpop.f32.mrf.mxu0
        %v2536 = vpop.f32.mrf.mxu0
        %v2537 = vadd.f32 %v2348, %v2536
        %v2538 = vpop.f32.mrf.mxu0
        %2539 = vmatprep.mubr.bf16.mxu0 0
        %2540 = vmatmul.mubr.bf16.gmra.mxu0 %v2400
        %v2541 = vpop.f32.mrf.mxu0
        %v2542 = vadd.f32 %v2348, %v2541
        %v2543 = vpop.f32.mrf.mxu0
        %v2544 = vpop.f32.mrf.mxu0
        %v2545 = vadd.f32 %v2348, %v2544
        %v2546 = vpop.f32.mrf.mxu0
        %2547 = vmatprep.mubr.bf16.mxu0 0
        %2548 = vmatmul.mubr.bf16.gmra.mxu0 %v2403
        %v2549 = vpop.f32.mrf.mxu0
        %v2550 = vadd.f32 %v2348, %v2549
        %v2551 = vpop.f32.mrf.mxu0
        %v2552 = vpop.f32.mrf.mxu0
        %v2553 = vadd.f32 %v2348, %v2552
        %v2554 = vpop.f32.mrf.mxu0
        %2555 = vmatprep.mubr.bf16.mxu0 0
        %2556 = vmatmul.mubr.bf16.gmra.mxu0 %v2406
        %v2557 = vpop.f32.mrf.mxu0
        %v2558 = vadd.f32 %v2348, %v2557
        %v2559 = vpop.f32.mrf.mxu0
        %v2560 = vpop.f32.mrf.mxu0
        %v2561 = vadd.f32 %v2348, %v2560
        %v2562 = vpop.f32.mrf.mxu0
        %2563 = vmatprep.mubr.bf16.mxu0 0
        %2564 = vmatmul.mubr.bf16.gmra.mxu0 %v2409
        %v2565 = vpop.f32.mrf.mxu0
        %v2566 = vadd.f32 %v2348, %v2565
        %v2567 = vpop.f32.mrf.mxu0
        %v2568 = vpop.f32.mrf.mxu0
        %v2569 = vadd.f32 %v2348, %v2568
        %v2570 = vpop.f32.mrf.mxu0
        %2571 = vdwg.mxu0
        %v2572 = vmax.f32 %v2446, 0.0
        %v2573 = vmax.f32 %v2449, 0.0
        %v2574 = vmax.f32 %v2454, 0.0
        %v2575 = vmax.f32 %v2457, 0.0
        %v2576 = vmax.f32 %v2462, 0.0
        %v2577 = vmax.f32 %v2465, 0.0
        %v2578 = vmax.f32 %v2470, 0.0
        %v2579 = vmax.f32 %v2473, 0.0
        %v2580 = vmax.f32 %v2478, 0.0
        %v2581 = vmax.f32 %v2481, 0.0
        %v2582 = vmax.f32 %v2486, 0.0
        %v2583 = vmax.f32 %v2489, 0.0
        %v2584 = vmax.f32 %v2494, 0.0
        %v2585 = vmax.f32 %v2497, 0.0
        %v2586 = vmax.f32 %v2502, 0.0
        %v2587 = vmax.f32 %v2505, 0.0
        %v2588 = vmax.f32 %v2510, 0.0
        %v2589 = vmax.f32 %v2513, 0.0
        %v2590 = vmax.f32 %v2518, 0.0
        %v2591 = vmax.f32 %v2521, 0.0
        %v2592 = vmax.f32 %v2526, 0.0
        %v2593 = vmax.f32 %v2529, 0.0
        %v2594 = vmax.f32 %v2534, 0.0
        %v2595 = vmax.f32 %v2537, 0.0
        %v2596 = vmax.f32 %v2542, 0.0
        %v2597 = vmax.f32 %v2545, 0.0
        %v2598 = vmax.f32 %v2550, 0.0
        %v2599 = vmax.f32 %v2553, 0.0
        %v2600 = vmax.f32 %v2558, 0.0
        %v2601 = vmax.f32 %v2561, 0.0
        %v2602 = vmax.f32 %v2566, 0.0
        %v2603 = vmax.f32 %v2569, 0.0
        %v2604 = vpack.c.bf16 %v2573, %v2572
        %v2605 = vpack.c.bf16 %v2575, %v2574
        %v2606 = vpack.c.bf16 %v2577, %v2576
        %v2607 = vpack.c.bf16 %v2579, %v2578
        %v2608 = vpack.c.bf16 %v2581, %v2580
        %v2609 = vpack.c.bf16 %v2583, %v2582
        %v2610 = vpack.c.bf16 %v2585, %v2584
        %v2611 = vpack.c.bf16 %v2587, %v2586
        %v2612 = vpack.c.bf16 %v2589, %v2588
        %v2613 = vpack.c.bf16 %v2591, %v2590
        %v2614 = vpack.c.bf16 %v2593, %v2592
        %v2615 = vpack.c.bf16 %v2595, %v2594
        %v2616 = vpack.c.bf16 %v2597, %v2596
        %v2617 = vpack.c.bf16 %v2599, %v2598
        %v2618 = vpack.c.bf16 %v2601, %v2600
        %v2619 = vpack.c.bf16 %v2603, %v2602
        %v2636 = vunpack.c.l.b16 %v2604
        %v2637 = vunpack.c.h.b16 %v2604
        %v2638 = vunpack.c.l.b16 %v2605
        %v2639 = vunpack.c.h.b16 %v2605
        %v2640 = vunpack.c.l.b16 %v2606
        %v2641 = vunpack.c.h.b16 %v2606
        %v2642 = vunpack.c.l.b16 %v2607
        %v2643 = vunpack.c.h.b16 %v2607
        %v2644 = vunpack.c.l.b16 %v2608
        %v2645 = vunpack.c.h.b16 %v2608
        %v2646 = vunpack.c.l.b16 %v2609
        %v2647 = vunpack.c.h.b16 %v2609
        %v2648 = vunpack.c.l.b16 %v2610
        %v2649 = vunpack.c.h.b16 %v2610
        %v2650 = vunpack.c.l.b16 %v2611
        %v2651 = vunpack.c.h.b16 %v2611
        %v2652 = vunpack.c.l.b16 %v2612
        %v2653 = vunpack.c.h.b16 %v2612
        %v2654 = vunpack.c.l.b16 %v2613
        %v2655 = vunpack.c.h.b16 %v2613
        %v2656 = vunpack.c.l.b16 %v2614
        %v2657 = vunpack.c.h.b16 %v2614
        %v2658 = vunpack.c.l.b16 %v2615
        %v2659 = vunpack.c.h.b16 %v2615
        %v2660 = vunpack.c.l.b16 %v2616
        %v2661 = vunpack.c.h.b16 %v2616
        %v2662 = vunpack.c.l.b16 %v2617
        %v2663 = vunpack.c.h.b16 %v2617
        %v2664 = vunpack.c.l.b16 %v2618
        %v2665 = vunpack.c.h.b16 %v2618
        %v2666 = vunpack.c.l.b16 %v2619
        %v2667 = vunpack.c.h.b16 %v2619
        %v2668 = vpack.c.b16 %v2636, %v2636
        %v2669 = vpack.c.b16 %v2637, %v2637
        %v2670 = vpack.c.b16 %v2638, %v2638
        %v2671 = vpack.c.b16 %v2639, %v2639
        %v2672 = vpack.c.b16 %v2640, %v2640
        %v2673 = vpack.c.b16 %v2641, %v2641
        %v2674 = vpack.c.b16 %v2642, %v2642
        %v2675 = vpack.c.b16 %v2643, %v2643
        %v2676 = vpack.c.b16 %v2644, %v2644
        %v2677 = vpack.c.b16 %v2645, %v2645
        %v2678 = vpack.c.b16 %v2646, %v2646
        %v2679 = vpack.c.b16 %v2647, %v2647
        %v2680 = vpack.c.b16 %v2648, %v2648
        %v2681 = vpack.c.b16 %v2649, %v2649
        %v2682 = vpack.c.b16 %v2650, %v2650
        %v2683 = vpack.c.b16 %v2651, %v2651
        %v2684 = vpack.c.b16 %v2652, %v2652
        %v2685 = vpack.c.b16 %v2653, %v2653
        %v2686 = vpack.c.b16 %v2654, %v2654
        %v2687 = vpack.c.b16 %v2655, %v2655
        %v2688 = vpack.c.b16 %v2656, %v2656
        %v2689 = vpack.c.b16 %v2657, %v2657
        %v2690 = vpack.c.b16 %v2658, %v2658
        %v2691 = vpack.c.b16 %v2659, %v2659
        %v2692 = vpack.c.b16 %v2660, %v2660
        %v2693 = vpack.c.b16 %v2661, %v2661
        %v2694 = vpack.c.b16 %v2662, %v2662
        %v2695 = vpack.c.b16 %v2663, %v2663
        %v2696 = vpack.c.b16 %v2664, %v2664
        %v2697 = vpack.c.b16 %v2665, %v2665
        %v2698 = vpack.c.b16 %v2666, %v2666
        %v2699 = vpack.c.b16 %v2667, %v2667
        %2732 = vst [vmem:[%s217] sm:$0xf] %v2668
        %2733 = vst [vmem:[%s217 + $0x4] sm:$0xf] %v2669
        %2734 = vst [vmem:[%s217 + $0x8] sm:$0xf] %v2670
        %2735 = vst [vmem:[%s217 + $0xc] sm:$0xf] %v2671
        %2736 = vst [vmem:[%s217 + $0x10] sm:$0xf] %v2672
        %2737 = vst [vmem:[%s217 + $0x14] sm:$0xf] %v2673
        %2738 = vst [vmem:[%s217 + $0x18] sm:$0xf] %v2674
        %2739 = vst [vmem:[%s217 + $0x1c] sm:$0xf] %v2675
        %2740 = vst [vmem:[%s217 + $0x20] sm:$0xf] %v2676
        %2741 = vst [vmem:[%s217 + $0x24] sm:$0xf] %v2677
        %2742 = vst [vmem:[%s217 + $0x28] sm:$0xf] %v2678
        %2743 = vst [vmem:[%s217 + $0x2c] sm:$0xf] %v2679
        %2744 = vst [vmem:[%s217 + $0x30] sm:$0xf] %v2680
        %2745 = vst [vmem:[%s217 + $0x34] sm:$0xf] %v2681
        %2746 = vst [vmem:[%s217 + $0x38] sm:$0xf] %v2682
        %2747 = vst [vmem:[%s217 + $0x3c] sm:$0xf] %v2683
        %2748 = vst [vmem:[%s217 + $0x40] sm:$0xf] %v2684
        %2749 = vst [vmem:[%s217 + $0x44] sm:$0xf] %v2685
        %2750 = vst [vmem:[%s217 + $0x48] sm:$0xf] %v2686
        %2751 = vst [vmem:[%s217 + $0x4c] sm:$0xf] %v2687
        %2752 = vst [vmem:[%s217 + $0x50] sm:$0xf] %v2688
        %2753 = vst [vmem:[%s217 + $0x54] sm:$0xf] %v2689
        %2754 = vst [vmem:[%s217 + $0x58] sm:$0xf] %v2690
        %2755 = vst [vmem:[%s217 + $0x5c] sm:$0xf] %v2691
        %2756 = vst [vmem:[%s217 + $0x60] sm:$0xf] %v2692
        %2757 = vst [vmem:[%s217 + $0x64] sm:$0xf] %v2693
        %2758 = vst [vmem:[%s217 + $0x68] sm:$0xf] %v2694
        %2759 = vst [vmem:[%s217 + $0x6c] sm:$0xf] %v2695
        %2760 = vst [vmem:[%s217 + $0x70] sm:$0xf] %v2696
        %2761 = vst [vmem:[%s217 + $0x74] sm:$0xf] %v2697
        %2762 = vst [vmem:[%s217 + $0x78] sm:$0xf] %v2698
        %2763 = vst [vmem:[%s217 + $0x7c] sm:$0xf] %v2699
        %s2764 = sand.u32 %s137, 1
        %s2765 = scalar_lea.sflag [#allocation3], %s2764
        %s2766 = sand.u32 %s137, 1
        %s2767 = smul.addr %s2766, 128
        %s2768 = scalar_lea.vmem [#allocation2], %s2767
        // Predicated region
        $region41: #{dws_conv_block_forward_nhwc.1} parent=39 // pred_check
          %p2769 = pneg %p147
        $region42: #{dws_conv_block_forward_nhwc.1} parent=39 // pred_check_branch
          %2771 = sbr.rel (%p2769) target = $region44
        $region43: #{dws_conv_block_forward_nhwc.1} parent=39 // pred_region
          %s2773 = ssub.s32 2048, 2048
          %2774 = vsyncadd %s2765, %s2773
          %s2775 = smul.addr %s19, 32
          %s2776 = smul.addr %s2775, 64
          %s2777 = scalar_lea.hbm %s5, %s2776
          %s2778 = sshll.u32 %s2768, 4
          %s2779 = int_to_ptr.vmem [resolvable:$true] %s2778
          %2784 = dma.vmem_to_hbm [thread:$0]  %s2779, 2048, %s2777, %s2765, 64, 64, 4
        $region44: #{dws_conv_block_forward_nhwc.1} parent=39 // pred_fallthru
          _
      $region40: #{dws_conv_block_forward_nhwc.1} parent=5 // pred_fallthru
        _
      %p2785 = scmp.le.s32.totalorder 2, %s14
      // Predicated region
      $region45: #{dws_conv_block_forward_nhwc.1} parent=5 // pred_check
        %p2786 = pneg %p2785
      $region46: #{dws_conv_block_forward_nhwc.1} parent=5 // pred_check_branch
        %2788 = sbr.rel (%p2786) target = $region48
      $region47: #{dws_conv_block_forward_nhwc.1} parent=5 // pred_region
        %s2789 = ssub.s32 %s14, 2
        // Predicated region
        $region49: #{dws_conv_block_forward_nhwc.1} parent=47 // pred_check
          %p2790 = pneg %p153
        $region50: #{dws_conv_block_forward_nhwc.1} parent=47 // pred_check_branch
          %2792 = sbr.rel (%p2790) target = $region52
        $region51: #{dws_conv_block_forward_nhwc.1} parent=47 // pred_region
          %s2793 = sand.u32 %s138, 1
          %s2794 = scalar_lea.sflag [#allocation3], %s2793
          %s2795 = sand.u32 %s138, 1
          %s2796 = smul.addr %s2795, 128
          %s2797 = scalar_lea.vmem [#allocation2], %s2796
          %2798 = dma.done %s2794, 2048
        $region52: #{dws_conv_block_forward_nhwc.1} parent=47 // pred_fallthru
          _
      $region48: #{dws_conv_block_forward_nhwc.1} parent=5 // pred_fallthru
        _
    $region6: #{dws_conv_block_forward_nhwc.1} parent=1 // loop_footer
      %s18 = sadd.s32 1, %s14
    $region7: #{dws_conv_block_forward_nhwc.1} parent=1 // loop_footer_branch
      %13 = sbr.rel target = $region3
    $region8: #{dws_conv_block_forward_nhwc.1} parent=1 // loop_exit
      _
    %2799 = vsyncpa [#allocation3], 1
    %s2800 = scalar_lea.sflag [#allocation3], 1
    %2801 = vsyncpa %s2800, 1

</llo_original>
